<compile_context>
chip_gen: v7x
topology: tpu7x:2x2x1
jax: 0.10.0
libtpu: 0.0.40
codegen_flags: <defaults>
</compile_context>

<pallas_src>
import jax
import jax.numpy as jnp
import numpy as np
from jax.experimental import pallas as pl
from jax.experimental.pallas import tpu as pltpu

_EPS = 1e-5


# ----------------------------- fused Pallas kernel ----------------------------

def down_fused_kernel(x_ref, a1_ref, b1_ref, w_ref, b2_ref, o_ref, zp_ref, col_ref):
    """Fused MaxPool2d(2) + BN1 + conv3x3(SAME) + BN2 for one image.

    x_ref  : (1, H2, 2, W2, 2*Cin) bf16  input; 2x2 window exposed by a free reshape
    a1_ref : (1, 1, Cin) f32             BN1 scale  (gamma1 / sqrt(var1+eps))
    b1_ref : (1, 1, Cin) f32             BN1 bias   (beta1 - mean1*scale1)
    w_ref  : (9*Cin, Cout) bf16          conv weights, BN2 scale folded into columns
    b2_ref : (1, Cout) f32               BN2 bias   (beta2 - mean2*scale2)
    o_ref  : (1, H2*W2, Cout) f32        output (true Cout channels, no lane padding)
    zp_ref : (H2+2, W2+2, Cin) bf16      zero-padded pooled plane (conv halo)
    col_ref: (H2, W2, 9*Cin) bf16        im2col scratch (taps in disjoint lane groups)
    """
    H2 = x_ref.shape[1]
    W2 = x_ref.shape[3]
    Cin = x_ref.shape[4] // 2
    K = 9 * Cin

    # ---- MaxPool2d(2): max over the 2x2 window (f32 math; v5e has no bf16 VPU) ------
    r0 = x_ref[0, :, 0, :, :].astype(jnp.float32)         # rows 2i   : (H2, W2, 2*Cin)
    r1 = x_ref[0, :, 1, :, :].astype(jnp.float32)         # rows 2i+1
    m = jnp.maximum(r0, r1)
    pooled = jnp.maximum(m[:, :, :Cin], m[:, :, Cin:])    # (H2, W2, Cin) f32

    # ---- BN1 as a safe affine (no division by gamma) ---------------------------------
    z = (pooled * a1_ref[...] + b1_ref[...]).astype(jnp.bfloat16)   # (H2, W2, Cin) bf16

    # ---- padded plane: zero ONLY the 1-pixel halo each step (megacore-safe),
    #      interior is overwritten right after ----------------------------------------
    zp_ref[0:1, :, :] = jnp.zeros((1, W2 + 2, Cin), jnp.bfloat16)
    zp_ref[H2 + 1:H2 + 2, :, :] = jnp.zeros((1, W2 + 2, Cin), jnp.bfloat16)
    zp_ref[1:H2 + 1, 0:1, :] = jnp.zeros((H2, 1, Cin), jnp.bfloat16)
    zp_ref[1:H2 + 1, W2 + 1:W2 + 2, :] = jnp.zeros((H2, 1, Cin), jnp.bfloat16)
    zp_ref[1:H2 + 1, 1:W2 + 1, :] = z

    # ---- im2col: 9 slab copies; tap t occupies lane group [t*Cin, (t+1)*Cin) ---------
    for dy in range(3):
        for dx in range(3):
            t = dy * 3 + dx
            col_ref[:, :, t * Cin:(t + 1) * Cin] = zp_ref[dy:dy + H2, dx:dx + W2, :]

    # ---- ONE MXU matmul per image: (H2*W2, 9*Cin) @ (9*Cin, Cout), f32 accumulation --
    lhs = col_ref[...].reshape(H2 * W2, K)                               # bf16
    acc = jnp.dot(lhs, w_ref[...], preferred_element_type=jnp.float32)   # (H2*W2, Cout)
    o_ref[0, :, :] = (acc + b2_ref[...]).astype(o_ref.dtype)


# --------------------------------- wrapper ------------------------------------

def down_forward(x_nchw, params):
    N, Cin, H, W = x_nchw.shape
    Cout = params["conv_w"].shape[0]
    H2, W2 = H // 2, W // 2
    f32 = jnp.float32

    # Fold BatchNorm running stats into affine terms (inference mode).
    s1 = params["bn1_gamma"] * jax.lax.rsqrt(params["bn1_var"] + _EPS)       # (Cin,)
    a1 = s1.reshape(1, 1, Cin).astype(f32)
    b1 = (params["bn1_beta"] - params["bn1_mean"] * s1).reshape(1, 1, Cin).astype(f32)
    s2 = params["bn2_gamma"] * jax.lax.rsqrt(params["bn2_var"] + _EPS)       # (Cout,)
    b2 = (params["bn2_beta"] - params["bn2_mean"] * s2).reshape(1, Cout).astype(f32)

    # Conv weights: (Cout,Cin,3,3) -> (3,3,Cin,Cout), fold BN2 scale into columns,
    # flatten taps into K = 9*Cin (row index = tap*Cin + ci, matching the im2col),
    # cast to bf16 for the MXU.
    w = jnp.transpose(params["conv_w"], (2, 3, 1, 0)) * s2[None, None, None, :]
    w = w.reshape(9 * Cin, Cout).astype(jnp.bfloat16)

    # Layout glue: one NCHW->NHWC pass in bf16 (half the HBM bytes of f32), then a
    # FREE row-major reshape exposing the 2x2 pool window.
    x = jnp.transpose(x_nchw, (0, 2, 3, 1)).astype(jnp.bfloat16)             # (N, H, W, Cin)
    x = x.reshape(N, H2, 2, W2, 2 * Cin)

    out = pl.pallas_call(
        down_fused_kernel,
        out_shape=jax.ShapeDtypeStruct((N, H2 * W2, Cout), f32),
        grid=(N,),
        in_specs=[
            pl.BlockSpec((1, H2, 2, W2, 2 * Cin), lambda b: (b, 0, 0, 0, 0)),
            pl.BlockSpec((1, 1, Cin), lambda b: (0, 0, 0)),       # resident
            pl.BlockSpec((1, 1, Cin), lambda b: (0, 0, 0)),       # resident
            pl.BlockSpec((9 * Cin, Cout), lambda b: (0, 0)),      # resident
            pl.BlockSpec((1, Cout), lambda b: (0, 0)),            # resident
        ],
        out_specs=pl.BlockSpec((1, H2 * W2, Cout), lambda b: (b, 0, 0)),
        scratch_shapes=[
            pltpu.VMEM((H2 + 2, W2 + 2, Cin), jnp.bfloat16),      # padded pooled plane
            pltpu.VMEM((H2, W2, 9 * Cin), jnp.bfloat16),          # im2col
        ],
        compiler_params=pltpu.CompilerParams(
            dimension_semantics=("parallel",),        # shard batch across v7x's 2 TCs
            vmem_limit_bytes=32 * 1024 * 1024,        # ample at these tiles; safe on all gens
        ),
    )(x, a1, b1, w, b2)

    out = out.reshape(N, H2, W2, Cout)
    return jnp.transpose(out, (0, 3, 1, 2))           # back to NCHW (tiny, real bytes only)


# --------------------------- params & pure-JAX reference ----------------------

def init_params(key, cin, cout):
    k = jax.random.split(key, 9)
    return {
        "bn1_gamma": jax.random.uniform(k[0], (cin,), jnp.float32, 0.5, 1.5),
        "bn1_beta":  jax.random.normal(k[1], (cin,), jnp.float32) * 0.1,
        "bn1_mean":  jax.random.normal(k[2], (cin,), jnp.float32) * 0.1,
        "bn1_var":   jax.random.uniform(k[3], (cin,), jnp.float32, 0.5, 1.5),
        "conv_w":    jax.random.normal(k[4], (cout, cin, 3, 3), jnp.float32) * 0.1,
        "bn2_gamma": jax.random.uniform(k[5], (cout,), jnp.float32, 0.5, 1.5),
        "bn2_beta":  jax.random.normal(k[6], (cout,), jnp.float32) * 0.1,
        "bn2_mean":  jax.random.normal(k[7], (cout,), jnp.float32) * 0.1,
        "bn2_var":   jax.random.uniform(k[8], (cout,), jnp.float32, 0.5, 1.5),
    }


def reference_forward(x_nchw, params):
    """Pure-JAX (f32) reference of the same forward, PyTorch semantics, NCHW."""
    def bn(v, g, b, m, var):
        g, b, m, var = (t[None, :, None, None] for t in (g, b, m, var))
        return (v - m) / jnp.sqrt(var + _EPS) * g + b

    pooled = jax.lax.reduce_window(x_nchw, -jnp.inf, jax.lax.max,
                                   (1, 1, 2, 2), (1, 1, 2, 2), "VALID")
    pooled = bn(pooled, params["bn1_gamma"], params["bn1_beta"],
                params["bn1_mean"], params["bn1_var"])
    conv = jax.lax.conv_general_dilated(
        pooled, params["conv_w"], window_strides=(1, 1), padding="SAME",
        dimension_numbers=("NCHW", "OIHW", "NCHW"))
    return bn(conv, params["bn2_gamma"], params["bn2_beta"],
              params["bn2_mean"], params["bn2_var"])


# ------------------------------------ main -------------------------------------

if __name__ == "__main__":
    key = jax.random.PRNGKey(0)
    kx, kp = jax.random.split(key)

    N, CIN, H, W, COUT = 2, 4, 16, 16, 8
    x = jax.random.normal(kx, (N, CIN, H, W), jnp.float32)
    params = init_params(kp, CIN, COUT)

    out = jax.jit(down_forward)(x, params)
    out = jax.block_until_ready(out)

    ref = jax.block_until_ready(reference_forward(x, params))
    assert out.shape == (N, COUT, H // 2, W // 2), out.shape
    # bf16 activations + bf16 weights (f32 accumulation): expected error O(1e-3..1e-2).
    np.testing.assert_allclose(np.asarray(out), np.asarray(ref), rtol=3e-2, atol=3e-2)

    print("KERNEL_OK")
</pallas_src>

<mosaic_0001>
module attributes {stable_mosaic.version = 11 : i64} {
  func.func @down_fused_kernel(%arg0: i32, %arg1: memref<1x8x2x8x8xbf16, #tpu.memory_space<vmem>>, %arg2: memref<1x1x4xf32, #tpu.memory_space<vmem>>, %arg3: memref<1x1x4xf32, #tpu.memory_space<vmem>>, %arg4: memref<36x8xbf16, #tpu.memory_space<vmem>>, %arg5: memref<1x8xf32, #tpu.memory_space<vmem>>, %arg6: memref<1x64x8xf32, #tpu.memory_space<vmem>>, %arg7: memref<10x10x4xbf16, #tpu.memory_space<vmem>>, %arg8: memref<8x8x36xbf16, #tpu.memory_space<vmem>>) attributes {dimension_semantics = [#tpu.dimension_semantics<parallel>], iteration_bounds = array<i64: 2>, scalar_prefetch = 0 : i64, scratch_operands = 2 : i64, tpu.core_type = #tpu.core_type<tc>, window_params = [{transform_indices = @transform_0, window_bounds = array<i64: 1, 8, 2, 8, 8>}, {pipeline_mode = #tpu.pipeline_mode<synchronous>, transform_indices = @transform_1, window_bounds = array<i64: 1, 1, 4>}, {pipeline_mode = #tpu.pipeline_mode<synchronous>, transform_indices = @transform_2, window_bounds = array<i64: 1, 1, 4>}, {pipeline_mode = #tpu.pipeline_mode<synchronous>, transform_indices = @transform_3, window_bounds = array<i64: 36, 8>}, {pipeline_mode = #tpu.pipeline_mode<synchronous>, transform_indices = @transform_4, window_bounds = array<i64: 1, 8>}, {transform_indices = @transform_5, window_bounds = array<i64: 1, 64, 8>}]} {
    %c0 = arith.constant 0 : index
    %c0_0 = arith.constant 0 : index
    %c0_1 = arith.constant 0 : index
    %c0_2 = arith.constant 0 : index
    %c0_3 = arith.constant 0 : index
    %0 = vector.load %arg1[%c0, %c0_0, %c0_1, %c0_2, %c0_3] : memref<1x8x2x8x8xbf16, #tpu.memory_space<vmem>>, vector<1x8x1x8x8xbf16>
    %1 = vector.shape_cast %0 : vector<1x8x1x8x8xbf16> to vector<8x8x8xbf16>
    %2 = arith.extf %1 : vector<8x8x8xbf16> to vector<8x8x8xf32>
    %c0_4 = arith.constant 0 : index
    %c0_5 = arith.constant 0 : index
    %c1 = arith.constant 1 : index
    %c0_6 = arith.constant 0 : index
    %c0_7 = arith.constant 0 : index
    %3 = vector.load %arg1[%c0_4, %c0_5, %c1, %c0_6, %c0_7] : memref<1x8x2x8x8xbf16, #tpu.memory_space<vmem>>, vector<1x8x1x8x8xbf16>
    %4 = vector.shape_cast %3 : vector<1x8x1x8x8xbf16> to vector<8x8x8xbf16>
    %5 = arith.extf %4 : vector<8x8x8xbf16> to vector<8x8x8xf32>
    %6 = arith.maximumf %2, %5 : vector<8x8x8xf32>
    %7 = vector.extract_strided_slice %6 {offsets = [0, 0, 0], sizes = [8, 8, 4], strides = [1, 1, 1]} : vector<8x8x8xf32> to vector<8x8x4xf32>
    %8 = vector.extract_strided_slice %6 {offsets = [0, 0, 4], sizes = [8, 8, 4], strides = [1, 1, 1]} : vector<8x8x8xf32> to vector<8x8x4xf32>
    %9 = arith.maximumf %7, %8 : vector<8x8x4xf32>
    %c0_8 = arith.constant 0 : index
    %c0_9 = arith.constant 0 : index
    %c0_10 = arith.constant 0 : index
    %10 = vector.load %arg2[%c0_8, %c0_9, %c0_10] : memref<1x1x4xf32, #tpu.memory_space<vmem>>, vector<1x1x4xf32>
    %11 = vector.broadcast %10 : vector<1x1x4xf32> to vector<8x8x4xf32>
    %12 = arith.mulf %9, %11 : vector<8x8x4xf32>
    %c0_11 = arith.constant 0 : index
    %c0_12 = arith.constant 0 : index
    %c0_13 = arith.constant 0 : index
    %13 = vector.load %arg3[%c0_11, %c0_12, %c0_13] : memref<1x1x4xf32, #tpu.memory_space<vmem>>, vector<1x1x4xf32>
    %14 = vector.broadcast %13 : vector<1x1x4xf32> to vector<8x8x4xf32>
    %15 = arith.addf %12, %14 : vector<8x8x4xf32>
    %16 = arith.truncf %15 : vector<8x8x4xf32> to vector<8x8x4xbf16>
    %cst = arith.constant 0.000000e+00 : bf16
    %17 = vector.broadcast %cst : bf16 to vector<1x10x4xbf16>
    %c0_14 = arith.constant 0 : index
    %c0_15 = arith.constant 0 : index
    %c0_16 = arith.constant 0 : index
    %18 = vector.load %arg7[%c0_14, %c0_15, %c0_16] : memref<10x10x4xbf16, #tpu.memory_space<vmem>>, vector<1x10x4xbf16>
    tpu.vector_store %arg7[%c0_14, %c0_15, %c0_16], %17 {strides = array<i32>} : memref<10x10x4xbf16, #tpu.memory_space<vmem>>, vector<1x10x4xbf16>,
    %cst_17 = arith.constant 0.000000e+00 : bf16
    %19 = vector.broadcast %cst_17 : bf16 to vector<1x10x4xbf16>
    %c9 = arith.constant 9 : index
    %c0_18 = arith.constant 0 : index
    %c0_19 = arith.constant 0 : index
    %20 = vector.load %arg7[%c9, %c0_18, %c0_19] : memref<10x10x4xbf16, #tpu.memory_space<vmem>>, vector<1x10x4xbf16>
    tpu.vector_store %arg7[%c9, %c0_18, %c0_19], %19 {strides = array<i32>} : memref<10x10x4xbf16, #tpu.memory_space<vmem>>, vector<1x10x4xbf16>,
    %cst_20 = arith.constant 0.000000e+00 : bf16
    %21 = vector.broadcast %cst_20 : bf16 to vector<8x1x4xbf16>
    %c1_21 = arith.constant 1 : index
    %c0_22 = arith.constant 0 : index
    %c0_23 = arith.constant 0 : index
    %22 = vector.load %arg7[%c1_21, %c0_22, %c0_23] : memref<10x10x4xbf16, #tpu.memory_space<vmem>>, vector<8x1x4xbf16>
    tpu.vector_store %arg7[%c1_21, %c0_22, %c0_23], %21 {strides = array<i32>} : memref<10x10x4xbf16, #tpu.memory_space<vmem>>, vector<8x1x4xbf16>,
    %cst_24 = arith.constant 0.000000e+00 : bf16
    %23 = vector.broadcast %cst_24 : bf16 to vector<8x1x4xbf16>
    %c1_25 = arith.constant 1 : index
    %c9_26 = arith.constant 9 : index
    %c0_27 = arith.constant 0 : index
    %24 = vector.load %arg7[%c1_25, %c9_26, %c0_27] : memref<10x10x4xbf16, #tpu.memory_space<vmem>>, vector<8x1x4xbf16>
    tpu.vector_store %arg7[%c1_25, %c9_26, %c0_27], %23 {strides = array<i32>} : memref<10x10x4xbf16, #tpu.memory_space<vmem>>, vector<8x1x4xbf16>,
    %c1_28 = arith.constant 1 : index
    %c1_29 = arith.constant 1 : index
    %c0_30 = arith.constant 0 : index
    %25 = vector.load %arg7[%c1_28, %c1_29, %c0_30] : memref<10x10x4xbf16, #tpu.memory_space<vmem>>, vector<8x8x4xbf16>
    tpu.vector_store %arg7[%c1_28, %c1_29, %c0_30], %16 {strides = array<i32>} : memref<10x10x4xbf16, #tpu.memory_space<vmem>>, vector<8x8x4xbf16>,
    %c0_31 = arith.constant 0 : index
    %c0_32 = arith.constant 0 : index
    %c0_33 = arith.constant 0 : index
    %26 = vector.load %arg7[%c0_31, %c0_32, %c0_33] : memref<10x10x4xbf16, #tpu.memory_space<vmem>>, vector<8x8x4xbf16>
    %c0_34 = arith.constant 0 : index
    %c0_35 = arith.constant 0 : index
    %c0_36 = arith.constant 0 : index
    %27 = vector.load %arg8[%c0_34, %c0_35, %c0_36] : memref<8x8x36xbf16, #tpu.memory_space<vmem>>, vector<8x8x4xbf16>
    tpu.vector_store %arg8[%c0_34, %c0_35, %c0_36], %26 {strides = array<i32>} : memref<8x8x36xbf16, #tpu.memory_space<vmem>>, vector<8x8x4xbf16>,
    %c0_37 = arith.constant 0 : index
    %c1_38 = arith.constant 1 : index
    %c0_39 = arith.constant 0 : index
    %28 = vector.load %arg7[%c0_37, %c1_38, %c0_39] : memref<10x10x4xbf16, #tpu.memory_space<vmem>>, vector<8x8x4xbf16>
    %c0_40 = arith.constant 0 : index
    %c0_41 = arith.constant 0 : index
    %c4 = arith.constant 4 : index
    %29 = vector.load %arg8[%c0_40, %c0_41, %c4] : memref<8x8x36xbf16, #tpu.memory_space<vmem>>, vector<8x8x4xbf16>
    tpu.vector_store %arg8[%c0_40, %c0_41, %c4], %28 {strides = array<i32>} : memref<8x8x36xbf16, #tpu.memory_space<vmem>>, vector<8x8x4xbf16>,
    %c0_42 = arith.constant 0 : index
    %c2 = arith.constant 2 : index
    %c0_43 = arith.constant 0 : index
    %30 = vector.load %arg7[%c0_42, %c2, %c0_43] : memref<10x10x4xbf16, #tpu.memory_space<vmem>>, vector<8x8x4xbf16>
    %c0_44 = arith.constant 0 : index
    %c0_45 = arith.constant 0 : index
    %c8 = arith.constant 8 : index
    %31 = vector.load %arg8[%c0_44, %c0_45, %c8] : memref<8x8x36xbf16, #tpu.memory_space<vmem>>, vector<8x8x4xbf16>
    tpu.vector_store %arg8[%c0_44, %c0_45, %c8], %30 {strides = array<i32>} : memref<8x8x36xbf16, #tpu.memory_space<vmem>>, vector<8x8x4xbf16>,
    %c1_46 = arith.constant 1 : index
    %c0_47 = arith.constant 0 : index
    %c0_48 = arith.constant 0 : index
    %32 = vector.load %arg7[%c1_46, %c0_47, %c0_48] : memref<10x10x4xbf16, #tpu.memory_space<vmem>>, vector<8x8x4xbf16>
    %c0_49 = arith.constant 0 : index
    %c0_50 = arith.constant 0 : index
    %c12 = arith.constant 12 : index
    %33 = vector.load %arg8[%c0_49, %c0_50, %c12] : memref<8x8x36xbf16, #tpu.memory_space<vmem>>, vector<8x8x4xbf16>
    tpu.vector_store %arg8[%c0_49, %c0_50, %c12], %32 {strides = array<i32>} : memref<8x8x36xbf16, #tpu.memory_space<vmem>>, vector<8x8x4xbf16>,
    %c1_51 = arith.constant 1 : index
    %c1_52 = arith.constant 1 : index
    %c0_53 = arith.constant 0 : index
    %34 = vector.load %arg7[%c1_51, %c1_52, %c0_53] : memref<10x10x4xbf16, #tpu.memory_space<vmem>>, vector<8x8x4xbf16>
    %c0_54 = arith.constant 0 : index
    %c0_55 = arith.constant 0 : index
    %c16 = arith.constant 16 : index
    %35 = vector.load %arg8[%c0_54, %c0_55, %c16] : memref<8x8x36xbf16, #tpu.memory_space<vmem>>, vector<8x8x4xbf16>
    tpu.vector_store %arg8[%c0_54, %c0_55, %c16], %34 {strides = array<i32>} : memref<8x8x36xbf16, #tpu.memory_space<vmem>>, vector<8x8x4xbf16>,
    %c1_56 = arith.constant 1 : index
    %c2_57 = arith.constant 2 : index
    %c0_58 = arith.constant 0 : index
    %36 = vector.load %arg7[%c1_56, %c2_57, %c0_58] : memref<10x10x4xbf16, #tpu.memory_space<vmem>>, vector<8x8x4xbf16>
    %c0_59 = arith.constant 0 : index
    %c0_60 = arith.constant 0 : index
    %c20 = arith.constant 20 : index
    %37 = vector.load %arg8[%c0_59, %c0_60, %c20] : memref<8x8x36xbf16, #tpu.memory_space<vmem>>, vector<8x8x4xbf16>
    tpu.vector_store %arg8[%c0_59, %c0_60, %c20], %36 {strides = array<i32>} : memref<8x8x36xbf16, #tpu.memory_space<vmem>>, vector<8x8x4xbf16>,
    %c2_61 = arith.constant 2 : index
    %c0_62 = arith.constant 0 : index
    %c0_63 = arith.constant 0 : index
    %38 = vector.load %arg7[%c2_61, %c0_62, %c0_63] : memref<10x10x4xbf16, #tpu.memory_space<vmem>>, vector<8x8x4xbf16>
    %c0_64 = arith.constant 0 : index
    %c0_65 = arith.constant 0 : index
    %c24 = arith.constant 24 : index
    %39 = vector.load %arg8[%c0_64, %c0_65, %c24] : memref<8x8x36xbf16, #tpu.memory_space<vmem>>, vector<8x8x4xbf16>
    tpu.vector_store %arg8[%c0_64, %c0_65, %c24], %38 {strides = array<i32>} : memref<8x8x36xbf16, #tpu.memory_space<vmem>>, vector<8x8x4xbf16>,
    %c2_66 = arith.constant 2 : index
    %c1_67 = arith.constant 1 : index
    %c0_68 = arith.constant 0 : index
    %40 = vector.load %arg7[%c2_66, %c1_67, %c0_68] : memref<10x10x4xbf16, #tpu.memory_space<vmem>>, vector<8x8x4xbf16>
    %c0_69 = arith.constant 0 : index
    %c0_70 = arith.constant 0 : index
    %c28 = arith.constant 28 : index
    %41 = vector.load %arg8[%c0_69, %c0_70, %c28] : memref<8x8x36xbf16, #tpu.memory_space<vmem>>, vector<8x8x4xbf16>
    tpu.vector_store %arg8[%c0_69, %c0_70, %c28], %40 {strides = array<i32>} : memref<8x8x36xbf16, #tpu.memory_space<vmem>>, vector<8x8x4xbf16>,
    %c2_71 = arith.constant 2 : index
    %c2_72 = arith.constant 2 : index
    %c0_73 = arith.constant 0 : index
    %42 = vector.load %arg7[%c2_71, %c2_72, %c0_73] : memref<10x10x4xbf16, #tpu.memory_space<vmem>>, vector<8x8x4xbf16>
    %c0_74 = arith.constant 0 : index
    %c0_75 = arith.constant 0 : index
    %c32 = arith.constant 32 : index
    %43 = vector.load %arg8[%c0_74, %c0_75, %c32] : memref<8x8x36xbf16, #tpu.memory_space<vmem>>, vector<8x8x4xbf16>
    tpu.vector_store %arg8[%c0_74, %c0_75, %c32], %42 {strides = array<i32>} : memref<8x8x36xbf16, #tpu.memory_space<vmem>>, vector<8x8x4xbf16>,
    %c0_76 = arith.constant 0 : index
    %c0_77 = arith.constant 0 : index
    %c0_78 = arith.constant 0 : index
    %44 = vector.load %arg8[%c0_76, %c0_77, %c0_78] : memref<8x8x36xbf16, #tpu.memory_space<vmem>>, vector<8x8x36xbf16>
    %45 = vector.shape_cast %44 : vector<8x8x36xbf16> to vector<64x36xbf16>
    %c0_79 = arith.constant 0 : index
    %c0_80 = arith.constant 0 : index
    %46 = vector.load %arg4[%c0_79, %c0_80] : memref<36x8xbf16, #tpu.memory_space<vmem>>, vector<36x8xbf16>
    %cst_81 = arith.constant dense<0.000000e+00> : vector<64x8xf32>
    %47 = tpu.matmul %45, %46, %cst_81 {dimension_numbers = #tpu.dot_dimension_numbers<[1], [0], [0], [1], [0, 0, 1, 1], [], []>} : vector<64x36xbf16>, vector<36x8xbf16>, vector<64x8xf32> -> vector<64x8xf32>
    %c0_82 = arith.constant 0 : index
    %c0_83 = arith.constant 0 : index
    %48 = vector.load %arg5[%c0_82, %c0_83] : memref<1x8xf32, #tpu.memory_space<vmem>>, vector<1x8xf32>
    %49 = vector.broadcast %48 : vector<1x8xf32> to vector<64x8xf32>
    %50 = arith.addf %47, %49 : vector<64x8xf32>
    %c0_84 = arith.constant 0 : index
    %c0_85 = arith.constant 0 : index
    %c0_86 = arith.constant 0 : index
    %51 = vector.load %arg6[%c0_84, %c0_85, %c0_86] : memref<1x64x8xf32, #tpu.memory_space<vmem>>, vector<1x64x8xf32>
    %52 = vector.shape_cast %51 : vector<1x64x8xf32> to vector<64x8xf32>
    %53 = vector.shape_cast %50 : vector<64x8xf32> to vector<1x64x8xf32>
    tpu.vector_store %arg6[%c0_84, %c0_85, %c0_86], %53 {strides = array<i32>} : memref<1x64x8xf32, #tpu.memory_space<vmem>>, vector<1x64x8xf32>,
    return
  }
  func.func @transform_0(%arg0: i32) -> (i32, i32, i32, i32, i32) {
    %c0_i32 = arith.constant 0 : i32
    %c0_i32_0 = arith.constant 0 : i32
    %c0_i32_1 = arith.constant 0 : i32
    %c0_i32_2 = arith.constant 0 : i32
    %c0_i32_3 = arith.constant 0 : i32
    return %arg0, %c0_i32, %c0_i32_0, %c0_i32_1, %c0_i32_2 : i32, i32, i32, i32, i32
  }
  func.func @transform_1(%arg0: i32) -> (i32, i32, i32) {
    %c0_i32 = arith.constant 0 : i32
    %c0_i32_0 = arith.constant 0 : i32
    %c0_i32_1 = arith.constant 0 : i32
    %c0_i32_2 = arith.constant 0 : i32
    return %c0_i32, %c0_i32_0, %c0_i32_1 : i32, i32, i32
  }
  func.func @transform_2(%arg0: i32) -> (i32, i32, i32) {
    %c0_i32 = arith.constant 0 : i32
    %c0_i32_0 = arith.constant 0 : i32
    %c0_i32_1 = arith.constant 0 : i32
    %c0_i32_2 = arith.constant 0 : i32
    return %c0_i32, %c0_i32_0, %c0_i32_1 : i32, i32, i32
  }
  func.func @transform_3(%arg0: i32) -> (i32, i32) {
    %c0_i32 = arith.constant 0 : i32
    %c0_i32_0 = arith.constant 0 : i32
    %c0_i32_1 = arith.constant 0 : i32
    return %c0_i32, %c0_i32_0 : i32, i32
  }
  func.func @transform_4(%arg0: i32) -> (i32, i32) {
    %c0_i32 = arith.constant 0 : i32
    %c0_i32_0 = arith.constant 0 : i32
    %c0_i32_1 = arith.constant 0 : i32
    return %c0_i32, %c0_i32_0 : i32, i32
  }
  func.func @transform_5(%arg0: i32) -> (i32, i32, i32) {
    %c0_i32 = arith.constant 0 : i32
    %c0_i32_0 = arith.constant 0 : i32
    %c0_i32_1 = arith.constant 0 : i32
    return %arg0, %c0_i32, %c0_i32_0 : i32, i32, i32
  }
}

</mosaic_0001>

<llo_original>
// kernel: down_forward.1
$region0: #{down_forward.1}
  #allocation0 [shape = 'u32[]', space=smem, size = 0x4, offset = 0x4, fixed_abs, tag = 'smem constant byte address 0x4 - core index']
  #allocation1 [shape = 'u32[144,128]{1,0:T(1,128)}', space=vmem, size = 0x12000, scoped, tag = 'internal scratch']
  #allocation2 [shape = 'bf16[10,10,4]{2,1,0:T(8,128)(2,1)}', space=vmem, size = 0xa000, scoped, tag = 'scratch operand']
  #allocation3 [shape = 'bf16[8,8,36]{2,1,0:T(8,128)(2,1)}', space=vmem, size = 0x4000, scoped, tag = 'scratch operand']
  %s0 = inlined_call_operand.vmem [shape: bf16[2,8,2,8,8], index: 0, kind: input, shape index: {}]
  %s1 = inlined_call_operand.vmem [shape: f32[1,1,4], index: 1, kind: input, shape index: {}]
  %s2 = inlined_call_operand.vmem [shape: f32[1,1,4], index: 2, kind: input, shape index: {}]
  %s3 = inlined_call_operand.vmem [shape: bf16[36,8], index: 3, kind: input, shape index: {}]
  %s4 = inlined_call_operand.vmem [shape: f32[1,8], index: 4, kind: input, shape index: {}]
  %s5 = inlined_call_operand.vmem [shape: f32[2,64,8], index: 5, kind: output, shape index: {}]
  %s6 = sld [smem:[#allocation0]]
  $region53: #{down_forward.1} parent=0
    _
  %s8 = ssub.s32 1, %s6
  %s9 = scalar_select 0, %s8, %s6
  loop: start=0, step=1, limit=4
  $region2: #{down_forward.1} parent=0 // loop_pre_header
    _
  $region3: #{down_forward.1} parent=0 // loop_header
    %s11 = sphi 0, %s15
    %p12 = scmp.ge.s32.totalorder %s11, 4
    %s21 = sphi 0, %s23
    %s24 = sphi 0, %s21
    %s25 = sphi 0, %s24
    %s41 = sphi 0, %s25
    %s45 = sphi 0, %s45
    %s47 = sphi 0, %s45
    %s48 = sphi 0, %s47
    %s62 = sphi 0, %s48
    %s66 = sphi 0, %s66
    %s68 = sphi 0, %s66
    %s69 = sphi 0, %s68
    %s83 = sphi 0, %s69
    %s87 = sphi 0, %s87
    %s89 = sphi 0, %s87
    %s90 = sphi 0, %s89
    %s104 = sphi 0, %s90
    %s108 = sphi 0, %s108
    %s110 = sphi 0, %s108
    %s111 = sphi 0, %s110
    %s125 = sphi 0, %s111
    %s131 = sphi 0, %s133
    %s134 = sphi 0, %s131
    %s135 = sphi 0, %s134
    %s151 = sphi 0, %s135
  $region4: #{down_forward.1} parent=0 // loop_header_branch
    %14 = sbr.rel (%p12) target = $region8
  $region5: #{down_forward.1} parent=0 // loop_body
    %s16 = ssub.s32 %s11, 1
    %s17 = ssub.s32 %s11, 2
    %s18 = sadd.s32 %s11, 1
    %s19 = ssub.s32 %s11, %s18
    %p20 = scmp.eq.s32.totalorder %s19, 0
    %s22 = sadd.s32 %s21, 1
    %s23 = scalar_select %p20, %s21, %s22
    %p26 = pneg %p20
    %p27 = scmp.eq.s32.totalorder %s11, 1
    %p28 = por %p26, %p27
    %p29 = scmp.ne.s32.totalorder %s21, %s24
    %p30 = scmp.eq.s32.totalorder %s11, 0
    %p31 = por %p29, %p30
    %p32 = scmp.ne.s32.totalorder %s21, %s24
    %p33 = scmp.eq.s32.totalorder %s16, 1
    %p34 = por %p32, %p33
    %p35 = scmp.ne.s32.totalorder %s24, %s25
    %p36 = scmp.eq.s32.totalorder %s16, 0
    %p37 = por %p35, %p36
    %p38 = scmp.ne.s32.totalorder %s24, %s25
    %p39 = scmp.eq.s32.totalorder %s17, 1
    %p40 = por %p38, %p39
    %p42 = scmp.ne.s32.totalorder %s25, %s41
    %p43 = scmp.eq.s32.totalorder %s17, 0
    %p44 = por %p42, %p43
    %s46 = sadd.s32 %s45, 1
    %p49 = scmp.eq.s32.totalorder %s11, 1
    %p50 = scmp.ne.s32.totalorder %s45, %s47
    %p51 = scmp.eq.s32.totalorder %s11, 0
    %p52 = por %p50, %p51
    %p53 = scmp.ne.s32.totalorder %s45, %s47
    %p54 = scmp.eq.s32.totalorder %s16, 1
    %p55 = por %p53, %p54
    %p56 = scmp.ne.s32.totalorder %s47, %s48
    %p57 = scmp.eq.s32.totalorder %s16, 0
    %p58 = por %p56, %p57
    %p59 = scmp.ne.s32.totalorder %s47, %s48
    %p60 = scmp.eq.s32.totalorder %s17, 1
    %p61 = por %p59, %p60
    %p63 = scmp.ne.s32.totalorder %s48, %s62
    %p64 = scmp.eq.s32.totalorder %s17, 0
    %p65 = por %p63, %p64
    %s67 = sadd.s32 %s66, 1
    %p70 = scmp.eq.s32.totalorder %s11, 1
    %p71 = scmp.ne.s32.totalorder %s66, %s68
    %p72 = scmp.eq.s32.totalorder %s11, 0
    %p73 = por %p71, %p72
    %p74 = scmp.ne.s32.totalorder %s66, %s68
    %p75 = scmp.eq.s32.totalorder %s16, 1
    %p76 = por %p74, %p75
    %p77 = scmp.ne.s32.totalorder %s68, %s69
    %p78 = scmp.eq.s32.totalorder %s16, 0
    %p79 = por %p77, %p78
    %p80 = scmp.ne.s32.totalorder %s68, %s69
    %p81 = scmp.eq.s32.totalorder %s17, 1
    %p82 = por %p80, %p81
    %p84 = scmp.ne.s32.totalorder %s69, %s83
    %p85 = scmp.eq.s32.totalorder %s17, 0
    %p86 = por %p84, %p85
    %s88 = sadd.s32 %s87, 1
    %p91 = scmp.eq.s32.totalorder %s11, 1
    %p92 = scmp.ne.s32.totalorder %s87, %s89
    %p93 = scmp.eq.s32.totalorder %s11, 0
    %p94 = por %p92, %p93
    %p95 = scmp.ne.s32.totalorder %s87, %s89
    %p96 = scmp.eq.s32.totalorder %s16, 1
    %p97 = por %p95, %p96
    %p98 = scmp.ne.s32.totalorder %s89, %s90
    %p99 = scmp.eq.s32.totalorder %s16, 0
    %p100 = por %p98, %p99
    %p101 = scmp.ne.s32.totalorder %s89, %s90
    %p102 = scmp.eq.s32.totalorder %s17, 1
    %p103 = por %p101, %p102
    %p105 = scmp.ne.s32.totalorder %s90, %s104
    %p106 = scmp.eq.s32.totalorder %s17, 0
    %p107 = por %p105, %p106
    %s109 = sadd.s32 %s108, 1
    %p112 = scmp.eq.s32.totalorder %s11, 1
    %p113 = scmp.ne.s32.totalorder %s108, %s110
    %p114 = scmp.eq.s32.totalorder %s11, 0
    %p115 = por %p113, %p114
    %p116 = scmp.ne.s32.totalorder %s108, %s110
    %p117 = scmp.eq.s32.totalorder %s16, 1
    %p118 = por %p116, %p117
    %p119 = scmp.ne.s32.totalorder %s110, %s111
    %p120 = scmp.eq.s32.totalorder %s16, 0
    %p121 = por %p119, %p120
    %p122 = scmp.ne.s32.totalorder %s110, %s111
    %p123 = scmp.eq.s32.totalorder %s17, 1
    %p124 = por %p122, %p123
    %p126 = scmp.ne.s32.totalorder %s111, %s125
    %p127 = scmp.eq.s32.totalorder %s17, 0
    %p128 = por %p126, %p127
    %s129 = ssub.s32 %s11, %s18
    %p130 = scmp.eq.s32.totalorder %s129, 0
    %s132 = sadd.s32 %s131, 1
    %s133 = scalar_select %p130, %s131, %s132
    %p136 = pneg %p130
    %p137 = scmp.eq.s32.totalorder %s11, 1
    %p138 = por %p136, %p137
    %p139 = scmp.ne.s32.totalorder %s131, %s134
    %p140 = scmp.eq.s32.totalorder %s11, 0
    %p141 = por %p139, %p140
    %p142 = scmp.ne.s32.totalorder %s131, %s134
    %p143 = scmp.eq.s32.totalorder %s16, 1
    %p144 = por %p142, %p143
    %p145 = scmp.ne.s32.totalorder %s134, %s135
    %p146 = scmp.eq.s32.totalorder %s16, 0
    %p147 = por %p145, %p146
    %p148 = scmp.ne.s32.totalorder %s134, %s135
    %p149 = scmp.eq.s32.totalorder %s17, 1
    %p150 = por %p148, %p149
    %p152 = scmp.ne.s32.totalorder %s135, %s151
    %p153 = scmp.eq.s32.totalorder %s17, 0
    %p154 = por %p152, %p153
    %p155 = scmp.le.s32.totalorder 1, %s11
    %p156 = scmp.lt.s32.totalorder %s11, 3
    %p157 = pnand %p155, %p156
    %p158 = pneg %p157
    // Predicated region
    $region9: #{down_forward.1} parent=5 // pred_check
      _
    $region10: #{down_forward.1} parent=5 // pred_check_branch
      %160 = sbr.rel (%p157) target = $region12
    $region11: #{down_forward.1} parent=5 // pred_region
      %s161 = ssub.s32 %s11, 1
      // Predicated region
      $region13: #{down_forward.1} parent=11 // pred_check
        %p162 = pneg %p58
      $region14: #{down_forward.1} parent=11 // pred_check_branch
        %164 = sbr.rel (%p162) target = $region16
      $region15: #{down_forward.1} parent=11 // pred_region
        _
      $region16: #{down_forward.1} parent=11 // pred_fallthru
        _
      // Predicated region
      $region17: #{down_forward.1} parent=11 // pred_check
        %p165 = pneg %p79
      $region18: #{down_forward.1} parent=11 // pred_check_branch
        %167 = sbr.rel (%p165) target = $region20
      $region19: #{down_forward.1} parent=11 // pred_region
        _
      $region20: #{down_forward.1} parent=11 // pred_fallthru
        _
      // Predicated region
      $region21: #{down_forward.1} parent=11 // pred_check
        %p168 = pneg %p100
      $region22: #{down_forward.1} parent=11 // pred_check_branch
        %170 = sbr.rel (%p168) target = $region24
      $region23: #{down_forward.1} parent=11 // pred_region
        _
      $region24: #{down_forward.1} parent=11 // pred_fallthru
        _
      // Predicated region
      $region25: #{down_forward.1} parent=11 // pred_check
        %p171 = pneg %p121
      $region26: #{down_forward.1} parent=11 // pred_check_branch
        %173 = sbr.rel (%p171) target = $region28
      $region27: #{down_forward.1} parent=11 // pred_region
        _
      $region28: #{down_forward.1} parent=11 // pred_fallthru
        _
    $region12: #{down_forward.1} parent=5 // pred_fallthru
      _
    %p174 = scmp.lt.s32.totalorder %s11, 2
    // Predicated region
    $region29: #{down_forward.1} parent=5 // pred_check
      %p175 = pneg %p174
    $region30: #{down_forward.1} parent=5 // pred_check_branch
      %177 = sbr.rel (%p175) target = $region32
    $region31: #{down_forward.1} parent=5 // pred_region
      // Predicated region
      $region33: #{down_forward.1} parent=31 // pred_check
        %p178 = pneg %p31
      $region34: #{down_forward.1} parent=31 // pred_check_branch
        %180 = sbr.rel (%p178) target = $region36
      $region35: #{down_forward.1} parent=31 // pred_region
        %p181 = scmp.lt.s32.totalorder %s11, 1
        %s182 = scalar_select %p181, %s11, 1
        %s183 = smul.addr %s182, 16
        %s184 = smul.addr %s183, 4
        %s185 = scalar_lea.vmem %s0, %s184
      $region36: #{down_forward.1} parent=31 // pred_fallthru
        _
    $region32: #{down_forward.1} parent=5 // pred_fallthru
      _
    %p186 = scmp.le.s32.totalorder 1, %s11
    %p187 = scmp.lt.s32.totalorder %s11, 3
    %p188 = pnand %p186, %p187
    %p189 = pneg %p188
    // Predicated region
    $region37: #{down_forward.1} parent=5 // pred_check
      _
    $region38: #{down_forward.1} parent=5 // pred_check_branch
      %191 = sbr.rel (%p188) target = $region40
    $region39: #{down_forward.1} parent=5 // pred_region
      %s192 = ssub.s32 %s11, 1
      %p193 = scmp.lt.s32.totalorder %s16, 1
      %s194 = scalar_select %p193, %s16, 1
      %s195 = smul.addr %s194, 16
      %s196 = smul.addr %s195, 4
      %s197 = scalar_lea.vmem %s0, %s196
      %p198 = pneg %p37
      %p199 = pneg %p34
      %p200 = pneg %p58
      %p201 = pneg %p55
      %p202 = pneg %p79
      %p203 = pneg %p76
      %p204 = pneg %p100
      %p205 = pneg %p97
      %p206 = pneg %p121
      %p207 = pneg %p118
      %p208 = pneg %p147
      %p209 = pneg %p144
      %p210 = scmp.lt.s32.totalorder %s16, 1
      %s211 = scalar_select %p210, %s16, 1
      %s212 = smul.addr %s211, 8
      %s213 = smul.addr %s212, 8
      %s214 = scalar_lea.vmem %s5, %s213
      %p215 = scmp.lt.s32.totalorder %s16, 1
      %s216 = scalar_select %p215, %s16, 1
      %s217 = smul.addr %s216, 16
      %s218 = smul.addr %s217, 4
      %s219 = scalar_lea.vmem %s0, %s218
      %p220 = scmp.lt.s32.totalorder %s16, 1
      %s221 = scalar_select %p220, %s16, 1
      %s222 = smul.addr %s221, 8
      %s223 = smul.addr %s222, 8
      %s224 = scalar_lea.vmem %s5, %s223
      %v226 = vld [vmem:[%s219] sm:$0xf]
      %v227 = vld [vmem:[%s219 + $0x8] sm:$0xf]
      %v228 = vld [vmem:[%s219 + $0x10] sm:$0xf]
      %v229 = vld [vmem:[%s219 + $0x18] sm:$0xf]
      %v230 = vld [vmem:[%s219 + $0x20] sm:$0xf]
      %v231 = vld [vmem:[%s219 + $0x28] sm:$0xf]
      %v232 = vld [vmem:[%s219 + $0x30] sm:$0xf]
      %v233 = vld [vmem:[%s219 + $0x38] sm:$0xf]
      %v234 = vunpack.c.l.bf16 %v226
      %v235 = vunpack.c.l.bf16 %v227
      %v236 = vunpack.c.l.bf16 %v228
      %v237 = vunpack.c.l.bf16 %v229
      %v238 = vunpack.c.l.bf16 %v230
      %v239 = vunpack.c.l.bf16 %v231
      %v240 = vunpack.c.l.bf16 %v232
      %v241 = vunpack.c.l.bf16 %v233
      %s242 = scalar_lea.vmem %s219, 4
      %v243 = vld [vmem:[%s242] sm:$0xf]
      %v244 = vld [vmem:[%s242 + $0x8] sm:$0xf]
      %v245 = vld [vmem:[%s242 + $0x10] sm:$0xf]
      %v246 = vld [vmem:[%s242 + $0x18] sm:$0xf]
      %v247 = vld [vmem:[%s242 + $0x20] sm:$0xf]
      %v248 = vld [vmem:[%s242 + $0x28] sm:$0xf]
      %v249 = vld [vmem:[%s242 + $0x30] sm:$0xf]
      %v250 = vld [vmem:[%s242 + $0x38] sm:$0xf]
      %v251 = vunpack.c.l.bf16 %v243
      %v252 = vunpack.c.l.bf16 %v244
      %v253 = vunpack.c.l.bf16 %v245
      %v254 = vunpack.c.l.bf16 %v246
      %v255 = vunpack.c.l.bf16 %v247
      %v256 = vunpack.c.l.bf16 %v248
      %v257 = vunpack.c.l.bf16 %v249
      %v258 = vunpack.c.l.bf16 %v250
      %v259 = vmax.f32 %v234, %v251
      %v260 = vmax.f32 %v235, %v252
      %v261 = vmax.f32 %v236, %v253
      %v262 = vmax.f32 %v237, %v254
      %v263 = vmax.f32 %v238, %v255
      %v264 = vmax.f32 %v239, %v256
      %v265 = vmax.f32 %v240, %v257
      %v266 = vmax.f32 %v241, %v258
      %275 = vrot.lane.b32.xlu0 %v259, 124
      %v276 = vpop.permute.xlu0 %275
      %277 = vrot.lane.b32.xlu0 %v260, 124
      %v278 = vpop.permute.xlu0 %277
      %279 = vrot.lane.b32.xlu0 %v261, 124
      %v280 = vpop.permute.xlu0 %279
      %281 = vrot.lane.b32.xlu0 %v262, 124
      %v282 = vpop.permute.xlu0 %281
      %283 = vrot.lane.b32.xlu0 %v263, 124
      %v284 = vpop.permute.xlu0 %283
      %285 = vrot.lane.b32.xlu0 %v264, 124
      %v286 = vpop.permute.xlu0 %285
      %287 = vrot.lane.b32.xlu0 %v265, 124
      %v288 = vpop.permute.xlu0 %287
      %289 = vrot.lane.b32.xlu0 %v266, 124
      %v290 = vpop.permute.xlu0 %289
      %v299 = vmax.f32 %v259, %v276
      %v300 = vmax.f32 %v260, %v278
      %v301 = vmax.f32 %v261, %v280
      %v302 = vmax.f32 %v262, %v282
      %v303 = vmax.f32 %v263, %v284
      %v304 = vmax.f32 %v264, %v286
      %v305 = vmax.f32 %v265, %v288
      %v306 = vmax.f32 %v266, %v290
      %v307 = vld [vmem:[%s1] sm:$0x1]
      %v309 = vlaneseq
      %v310 = vshrl.u32 %v309, 7
      %v311 = vsub.s32 0, %v310
      %v312 = vrot.slane %v307, %v311
      %v314 = vmul.f32 %v299, %v312
      %v315 = vmul.f32 %v300, %v312
      %v316 = vmul.f32 %v301, %v312
      %v317 = vmul.f32 %v302, %v312
      %v318 = vmul.f32 %v303, %v312
      %v319 = vmul.f32 %v304, %v312
      %v320 = vmul.f32 %v305, %v312
      %v321 = vmul.f32 %v306, %v312
      %v322 = vld [vmem:[%s2] sm:$0x1]
      %v324 = vlaneseq
      %v325 = vshrl.u32 %v324, 7
      %v326 = vsub.s32 0, %v325
      %v327 = vrot.slane %v322, %v326
      %v329 = vadd.f32 %v314, %v327
      %v330 = vadd.f32 %v315, %v327
      %v331 = vadd.f32 %v316, %v327
      %v332 = vadd.f32 %v317, %v327
      %v333 = vadd.f32 %v318, %v327
      %v334 = vadd.f32 %v319, %v327
      %v335 = vadd.f32 %v320, %v327
      %v336 = vadd.f32 %v321, %v327
      %v337 = vpack.c.bf16 %v329, %v329
      %v338 = vpack.c.bf16 %v330, %v330
      %v339 = vpack.c.bf16 %v331, %v331
      %v340 = vpack.c.bf16 %v332, %v332
      %v341 = vpack.c.bf16 %v333, %v333
      %v342 = vpack.c.bf16 %v334, %v334
      %v343 = vpack.c.bf16 %v335, %v335
      %v344 = vpack.c.bf16 %v336, %v336
      %vm345 = vcmask 27648
      %346 = vst.msk [vmem:[#allocation2] sm:$0xf] %vm345, 0
      %vm347 = vcmask 24576
      %348 = vst.msk [vmem:[#allocation2 + $0x4] sm:$0x1] %vm347, 0
      %s349 = scalar_lea.vmem [#allocation2], 72
      %350 = vst.msk [vmem:[%s349] sm:$0xf] %vm345, 0
      %351 = vst.msk [vmem:[%s349 + $0x4] sm:$0x1] %vm347, 0
      %s352 = scalar_lea.vmem [#allocation2], 8
      %vm353 = vcmask 24576
      %vm354 = vsmask.f32 256
      %vm355 = vmand %vm353, %vm354
      %v356 = vld [vmem:[%s352] sm:$0x1]
      %v357 = vsel %vm355, 0, %v356
      %358 = vst [vmem:[%s352] sm:$0x1] %v357
      %v359 = vld [vmem:[%s352 + $0x8] sm:$0x1]
      %v360 = vsel %vm355, 0, %v359
      %361 = vst [vmem:[%s352 + $0x8] sm:$0x1] %v360
      %v362 = vld [vmem:[%s352 + $0x10] sm:$0x1]
      %v363 = vsel %vm355, 0, %v362
      %364 = vst [vmem:[%s352 + $0x10] sm:$0x1] %v363
      %v365 = vld [vmem:[%s352 + $0x18] sm:$0x1]
      %v366 = vsel %vm355, 0, %v365
      %367 = vst [vmem:[%s352 + $0x18] sm:$0x1] %v366
      %v368 = vld [vmem:[%s352 + $0x20] sm:$0x1]
      %v369 = vsel %vm355, 0, %v368
      %370 = vst [vmem:[%s352 + $0x20] sm:$0x1] %v369
      %v371 = vld [vmem:[%s352 + $0x28] sm:$0x1]
      %v372 = vsel %vm355, 0, %v371
      %373 = vst [vmem:[%s352 + $0x28] sm:$0x1] %v372
      %v374 = vld [vmem:[%s352 + $0x30] sm:$0x1]
      %v375 = vsel %vm355, 0, %v374
      %376 = vst [vmem:[%s352 + $0x30] sm:$0x1] %v375
      %v377 = vld [vmem:[%s352 + $0x38] sm:$0x1]
      %v378 = vsel %vm355, 0, %v377
      %379 = vst [vmem:[%s352 + $0x38] sm:$0x1] %v378
      %vm380 = vsmask.f32 7938
      %vm381 = vmand %vm353, %vm380
      %v382 = vld [vmem:[%s352 + $0x4] sm:$0x1]
      %v383 = vsel %vm381, 0, %v382
      %384 = vst [vmem:[%s352 + $0x4] sm:$0x1] %v383
      %v385 = vld [vmem:[%s352 + $0xc] sm:$0x1]
      %v386 = vsel %vm381, 0, %v385
      %387 = vst [vmem:[%s352 + $0xc] sm:$0x1] %v386
      %v388 = vld [vmem:[%s352 + $0x14] sm:$0x1]
      %v389 = vsel %vm381, 0, %v388
      %390 = vst [vmem:[%s352 + $0x14] sm:$0x1] %v389
      %v391 = vld [vmem:[%s352 + $0x1c] sm:$0x1]
      %v392 = vsel %vm381, 0, %v391
      %393 = vst [vmem:[%s352 + $0x1c] sm:$0x1] %v392
      %v394 = vld [vmem:[%s352 + $0x24] sm:$0x1]
      %v395 = vsel %vm381, 0, %v394
      %396 = vst [vmem:[%s352 + $0x24] sm:$0x1] %v395
      %v397 = vld [vmem:[%s352 + $0x2c] sm:$0x1]
      %v398 = vsel %vm381, 0, %v397
      %399 = vst [vmem:[%s352 + $0x2c] sm:$0x1] %v398
      %v400 = vld [vmem:[%s352 + $0x34] sm:$0x1]
      %v401 = vsel %vm381, 0, %v400
      %402 = vst [vmem:[%s352 + $0x34] sm:$0x1] %v401
      %v403 = vld [vmem:[%s352 + $0x3c] sm:$0x1]
      %v404 = vsel %vm381, 0, %v403
      %405 = vst [vmem:[%s352 + $0x3c] sm:$0x1] %v404
      %v414 = vunpack.c.l.b16 %v337
      %v415 = vunpack.c.l.b16 %v338
      %v416 = vunpack.c.l.b16 %v339
      %v417 = vunpack.c.l.b16 %v340
      %v418 = vunpack.c.l.b16 %v341
      %v419 = vunpack.c.l.b16 %v342
      %v420 = vunpack.c.l.b16 %v343
      %v421 = vunpack.c.l.b16 %v344
      %v422 = vpack.c.b16 %v414, %v414
      %v423 = vpack.c.b16 %v415, %v415
      %v424 = vpack.c.b16 %v416, %v416
      %v425 = vpack.c.b16 %v417, %v417
      %v426 = vpack.c.b16 %v418, %v418
      %v427 = vpack.c.b16 %v419, %v419
      %v428 = vpack.c.b16 %v420, %v420
      %v429 = vpack.c.b16 %v421, %v421
      %v431 = vshrl.u32 %v422, 16
      %v433 = vrot.slane %v431, 7
      %v434 = vshll.u32 %v422, 16
      %v436 = vor.u32 %v433, %v434
      %v437 = vrot.slane %v433, 4
      %v439 = vshrl.u32 %v423, 16
      %v441 = vrot.slane %v439, 7
      %v442 = vshll.u32 %v423, 16
      %v444 = vor.u32 %v441, %v442
      %v445 = vrot.slane %v441, 4
      %v447 = vshrl.u32 %v424, 16
      %v449 = vrot.slane %v447, 7
      %v450 = vshll.u32 %v424, 16
      %v452 = vor.u32 %v449, %v450
      %v453 = vrot.slane %v449, 4
      %v455 = vshrl.u32 %v425, 16
      %v457 = vrot.slane %v455, 7
      %v458 = vshll.u32 %v425, 16
      %v460 = vor.u32 %v457, %v458
      %v461 = vrot.slane %v457, 4
      %v463 = vshrl.u32 %v426, 16
      %v465 = vrot.slane %v463, 7
      %v466 = vshll.u32 %v426, 16
      %v468 = vor.u32 %v465, %v466
      %v469 = vrot.slane %v465, 4
      %v471 = vshrl.u32 %v427, 16
      %v473 = vrot.slane %v471, 7
      %v474 = vshll.u32 %v427, 16
      %v476 = vor.u32 %v473, %v474
      %v477 = vrot.slane %v473, 4
      %v479 = vshrl.u32 %v428, 16
      %v481 = vrot.slane %v479, 7
      %v482 = vshll.u32 %v428, 16
      %v484 = vor.u32 %v481, %v482
      %v485 = vrot.slane %v481, 4
      %v487 = vshrl.u32 %v429, 16
      %v489 = vrot.slane %v487, 7
      %v490 = vshll.u32 %v429, 16
      %v492 = vor.u32 %v489, %v490
      %v493 = vrot.slane %v489, 4
      %vm510 = vcmask 27648
      %vm511 = vmand %vm510, %vm380
      %v512 = vld [vmem:[%s352] sm:$0xf]
      %v513 = vsel %vm511, %v436, %v512
      %514 = vst [vmem:[%s352] sm:$0xf] %v513
      %v515 = vld [vmem:[%s352 + $0x4] sm:$0x1]
      %v516 = vsel %vm355, %v437, %v515
      %517 = vst [vmem:[%s352 + $0x4] sm:$0x1] %v516
      %v518 = vld [vmem:[%s352 + $0x8] sm:$0xf]
      %v519 = vsel %vm511, %v444, %v518
      %520 = vst [vmem:[%s352 + $0x8] sm:$0xf] %v519
      %v521 = vld [vmem:[%s352 + $0xc] sm:$0x1]
      %v522 = vsel %vm355, %v445, %v521
      %523 = vst [vmem:[%s352 + $0xc] sm:$0x1] %v522
      %v524 = vld [vmem:[%s352 + $0x10] sm:$0xf]
      %v525 = vsel %vm511, %v452, %v524
      %526 = vst [vmem:[%s352 + $0x10] sm:$0xf] %v525
      %v527 = vld [vmem:[%s352 + $0x14] sm:$0x1]
      %v528 = vsel %vm355, %v453, %v527
      %529 = vst [vmem:[%s352 + $0x14] sm:$0x1] %v528
      %v530 = vld [vmem:[%s352 + $0x18] sm:$0xf]
      %v531 = vsel %vm511, %v460, %v530
      %532 = vst [vmem:[%s352 + $0x18] sm:$0xf] %v531
      %v533 = vld [vmem:[%s352 + $0x1c] sm:$0x1]
      %v534 = vsel %vm355, %v461, %v533
      %535 = vst [vmem:[%s352 + $0x1c] sm:$0x1] %v534
      %v536 = vld [vmem:[%s352 + $0x20] sm:$0xf]
      %v537 = vsel %vm511, %v468, %v536
      %538 = vst [vmem:[%s352 + $0x20] sm:$0xf] %v537
      %v539 = vld [vmem:[%s352 + $0x24] sm:$0x1]
      %v540 = vsel %vm355, %v469, %v539
      %541 = vst [vmem:[%s352 + $0x24] sm:$0x1] %v540
      %v542 = vld [vmem:[%s352 + $0x28] sm:$0xf]
      %v543 = vsel %vm511, %v476, %v542
      %544 = vst [vmem:[%s352 + $0x28] sm:$0xf] %v543
      %v545 = vld [vmem:[%s352 + $0x2c] sm:$0x1]
      %v546 = vsel %vm355, %v477, %v545
      %547 = vst [vmem:[%s352 + $0x2c] sm:$0x1] %v546
      %v548 = vld [vmem:[%s352 + $0x30] sm:$0xf]
      %v549 = vsel %vm511, %v484, %v548
      %550 = vst [vmem:[%s352 + $0x30] sm:$0xf] %v549
      %v551 = vld [vmem:[%s352 + $0x34] sm:$0x1]
      %v552 = vsel %vm355, %v485, %v551
      %553 = vst [vmem:[%s352 + $0x34] sm:$0x1] %v552
      %v554 = vld [vmem:[%s352 + $0x38] sm:$0xf]
      %v555 = vsel %vm511, %v492, %v554
      %556 = vst [vmem:[%s352 + $0x38] sm:$0xf] %v555
      %v557 = vld [vmem:[%s352 + $0x3c] sm:$0x1]
      %v558 = vsel %vm355, %v493, %v557
      %559 = vst [vmem:[%s352 + $0x3c] sm:$0x1] %v558
      %v560 = vld [vmem:[#allocation2] sm:$0xf]
      %v561 = vld [vmem:[#allocation2 + $0x8] sm:$0xf]
      %v562 = vld [vmem:[#allocation2 + $0x10] sm:$0xf]
      %v563 = vld [vmem:[#allocation2 + $0x18] sm:$0xf]
      %v564 = vld [vmem:[#allocation2 + $0x20] sm:$0xf]
      %v565 = vld [vmem:[#allocation2 + $0x28] sm:$0xf]
      %v566 = vld [vmem:[#allocation2 + $0x30] sm:$0xf]
      %v567 = vld [vmem:[#allocation2 + $0x38] sm:$0xf]
      %568 = vst.msk [vmem:[#allocation3] sm:$0xf] %vm345, %v560
      %569 = vst.msk [vmem:[#allocation3 + $0x4] sm:$0xf] %vm345, %v561
      %570 = vst.msk [vmem:[#allocation3 + $0x8] sm:$0xf] %vm345, %v562
      %571 = vst.msk [vmem:[#allocation3 + $0xc] sm:$0xf] %vm345, %v563
      %572 = vst.msk [vmem:[#allocation3 + $0x10] sm:$0xf] %vm345, %v564
      %573 = vst.msk [vmem:[#allocation3 + $0x14] sm:$0xf] %vm345, %v565
      %574 = vst.msk [vmem:[#allocation3 + $0x18] sm:$0xf] %vm345, %v566
      %575 = vst.msk [vmem:[#allocation3 + $0x1c] sm:$0xf] %vm345, %v567
      %v576 = vld [vmem:[#allocation2] sm:$0xf]
      %v577 = vld [vmem:[#allocation2 + $0x4] sm:$0x1]
      %v578 = vld [vmem:[#allocation2 + $0x8] sm:$0xf]
      %v579 = vld [vmem:[#allocation2 + $0xc] sm:$0x1]
      %v580 = vld [vmem:[#allocation2 + $0x10] sm:$0xf]
      %v581 = vld [vmem:[#allocation2 + $0x14] sm:$0x1]
      %v582 = vld [vmem:[#allocation2 + $0x18] sm:$0xf]
      %v583 = vld [vmem:[#allocation2 + $0x1c] sm:$0x1]
      %v584 = vld [vmem:[#allocation2 + $0x20] sm:$0xf]
      %v585 = vld [vmem:[#allocation2 + $0x24] sm:$0x1]
      %v586 = vld [vmem:[#allocation2 + $0x28] sm:$0xf]
      %v587 = vld [vmem:[#allocation2 + $0x2c] sm:$0x1]
      %v588 = vld [vmem:[#allocation2 + $0x30] sm:$0xf]
      %v589 = vld [vmem:[#allocation2 + $0x34] sm:$0x1]
      %v590 = vld [vmem:[#allocation2 + $0x38] sm:$0xf]
      %v591 = vld [vmem:[#allocation2 + $0x3c] sm:$0x1]
      %vm592 = vsmask.f32 3328
      %vm593 = vsmask.f32 7440
      %vm594 = vmor %vm592, %vm593
      %v596 = vshrl.u32 %v576, 16
      %v598 = vrot.slane %v596, 4
      %v599 = vshll.u32 %v576, 16
      %v601 = vrot.slane %v599, 5
      %v602 = vor.u32 %v598, %v601
      %v603 = vrot.slane %v602, 4
      %v605 = vshll.u32 %v577, 16
      %v607 = vrot.slane %v605, 5
      %v608 = vsel %vm594, %v603, %v607
      %v610 = vshrl.u32 %v578, 16
      %v612 = vrot.slane %v610, 4
      %v613 = vshll.u32 %v578, 16
      %v615 = vrot.slane %v613, 5
      %v616 = vor.u32 %v612, %v615
      %v617 = vrot.slane %v616, 4
      %v619 = vshll.u32 %v579, 16
      %v621 = vrot.slane %v619, 5
      %v622 = vsel %vm594, %v617, %v621
      %v624 = vshrl.u32 %v580, 16
      %v626 = vrot.slane %v624, 4
      %v627 = vshll.u32 %v580, 16
      %v629 = vrot.slane %v627, 5
      %v630 = vor.u32 %v626, %v629
      %v631 = vrot.slane %v630, 4
      %v633 = vshll.u32 %v581, 16
      %v635 = vrot.slane %v633, 5
      %v636 = vsel %vm594, %v631, %v635
      %v638 = vshrl.u32 %v582, 16
      %v640 = vrot.slane %v638, 4
      %v641 = vshll.u32 %v582, 16
      %v643 = vrot.slane %v641, 5
      %v644 = vor.u32 %v640, %v643
      %v645 = vrot.slane %v644, 4
      %v647 = vshll.u32 %v583, 16
      %v649 = vrot.slane %v647, 5
      %v650 = vsel %vm594, %v645, %v649
      %v652 = vshrl.u32 %v584, 16
      %v654 = vrot.slane %v652, 4
      %v655 = vshll.u32 %v584, 16
      %v657 = vrot.slane %v655, 5
      %v658 = vor.u32 %v654, %v657
      %v659 = vrot.slane %v658, 4
      %v661 = vshll.u32 %v585, 16
      %v663 = vrot.slane %v661, 5
      %v664 = vsel %vm594, %v659, %v663
      %v666 = vshrl.u32 %v586, 16
      %v668 = vrot.slane %v666, 4
      %v669 = vshll.u32 %v586, 16
      %v671 = vrot.slane %v669, 5
      %v672 = vor.u32 %v668, %v671
      %v673 = vrot.slane %v672, 4
      %v675 = vshll.u32 %v587, 16
      %v677 = vrot.slane %v675, 5
      %v678 = vsel %vm594, %v673, %v677
      %v680 = vshrl.u32 %v588, 16
      %v682 = vrot.slane %v680, 4
      %v683 = vshll.u32 %v588, 16
      %v685 = vrot.slane %v683, 5
      %v686 = vor.u32 %v682, %v685
      %v687 = vrot.slane %v686, 4
      %v689 = vshll.u32 %v589, 16
      %v691 = vrot.slane %v689, 5
      %v692 = vsel %vm594, %v687, %v691
      %v694 = vshrl.u32 %v590, 16
      %v696 = vrot.slane %v694, 4
      %v697 = vshll.u32 %v590, 16
      %v699 = vrot.slane %v697, 5
      %v700 = vor.u32 %v696, %v699
      %v701 = vrot.slane %v700, 4
      %v703 = vshll.u32 %v591, 16
      %v705 = vrot.slane %v703, 5
      %v706 = vsel %vm594, %v701, %v705
      %707 = vrot.lane.b32.xlu0 %v608, 4
      %v708 = vpop.permute.xlu0 %707
      %709 = vrot.lane.b32.xlu0 %v622, 4
      %v710 = vpop.permute.xlu0 %709
      %711 = vrot.lane.b32.xlu0 %v636, 4
      %v712 = vpop.permute.xlu0 %711
      %713 = vrot.lane.b32.xlu0 %v650, 4
      %v714 = vpop.permute.xlu0 %713
      %715 = vrot.lane.b32.xlu0 %v664, 4
      %v716 = vpop.permute.xlu0 %715
      %717 = vrot.lane.b32.xlu0 %v678, 4
      %v718 = vpop.permute.xlu0 %717
      %719 = vrot.lane.b32.xlu0 %v692, 4
      %v720 = vpop.permute.xlu0 %719
      %721 = vrot.lane.b32.xlu0 %v706, 4
      %v722 = vpop.permute.xlu0 %721
      %vm731 = vcmask 60448
      %732 = vst.msk [vmem:[#allocation3] sm:$0xf] %vm731, %v708
      %733 = vst.msk [vmem:[#allocation3 + $0x4] sm:$0xf] %vm731, %v710
      %734 = vst.msk [vmem:[#allocation3 + $0x8] sm:$0xf] %vm731, %v712
      %735 = vst.msk [vmem:[#allocation3 + $0xc] sm:$0xf] %vm731, %v714
      %736 = vst.msk [vmem:[#allocation3 + $0x10] sm:$0xf] %vm731, %v716
      %737 = vst.msk [vmem:[#allocation3 + $0x14] sm:$0xf] %vm731, %v718
      %738 = vst.msk [vmem:[#allocation3 + $0x18] sm:$0xf] %vm731, %v720
      %739 = vst.msk [vmem:[#allocation3 + $0x1c] sm:$0xf] %vm731, %v722
      %v740 = vld [vmem:[#allocation2] sm:$0xe]
      %v741 = vld [vmem:[#allocation2 + $0x4] sm:$0x1]
      %v742 = vld [vmem:[#allocation2 + $0x8] sm:$0xe]
      %v743 = vld [vmem:[#allocation2 + $0xc] sm:$0x1]
      %v744 = vld [vmem:[#allocation2 + $0x10] sm:$0xe]
      %v745 = vld [vmem:[#allocation2 + $0x14] sm:$0x1]
      %v746 = vld [vmem:[#allocation2 + $0x18] sm:$0xe]
      %v747 = vld [vmem:[#allocation2 + $0x1c] sm:$0x1]
      %v748 = vld [vmem:[#allocation2 + $0x20] sm:$0xe]
      %v749 = vld [vmem:[#allocation2 + $0x24] sm:$0x1]
      %v750 = vld [vmem:[#allocation2 + $0x28] sm:$0xe]
      %v751 = vld [vmem:[#allocation2 + $0x2c] sm:$0x1]
      %v752 = vld [vmem:[#allocation2 + $0x30] sm:$0xe]
      %v753 = vld [vmem:[#allocation2 + $0x34] sm:$0x1]
      %v754 = vld [vmem:[#allocation2 + $0x38] sm:$0xe]
      %v755 = vld [vmem:[#allocation2 + $0x3c] sm:$0x1]
      %vm772 = vcmask 1042432
      %vm773 = vcmask 1046532
      %vm774 = vmor %vm772, %vm773
      %v775 = vrot.slane %v740, 5
      %v776 = vrot.slane %v775, 4
      %v777 = vrot.slane %v741, 5
      %v778 = vsel %vm774, %v776, %v777
      %v779 = vrot.slane %v742, 5
      %v780 = vrot.slane %v779, 4
      %v781 = vrot.slane %v743, 5
      %v782 = vsel %vm774, %v780, %v781
      %v783 = vrot.slane %v744, 5
      %v784 = vrot.slane %v783, 4
      %v785 = vrot.slane %v745, 5
      %v786 = vsel %vm774, %v784, %v785
      %v787 = vrot.slane %v746, 5
      %v788 = vrot.slane %v787, 4
      %v789 = vrot.slane %v747, 5
      %v790 = vsel %vm774, %v788, %v789
      %v791 = vrot.slane %v748, 5
      %v792 = vrot.slane %v791, 4
      %v793 = vrot.slane %v749, 5
      %v794 = vsel %vm774, %v792, %v793
      %v795 = vrot.slane %v750, 5
      %v796 = vrot.slane %v795, 4
      %v797 = vrot.slane %v751, 5
      %v798 = vsel %vm774, %v796, %v797
      %v799 = vrot.slane %v752, 5
      %v800 = vrot.slane %v799, 4
      %v801 = vrot.slane %v753, 5
      %v802 = vsel %vm774, %v800, %v801
      %v803 = vrot.slane %v754, 5
      %v804 = vrot.slane %v803, 4
      %v805 = vrot.slane %v755, 5
      %v806 = vsel %vm774, %v804, %v805
      %807 = vrot.lane.b32.xlu0 %v778, 8
      %v808 = vpop.permute.xlu0 %807
      %809 = vrot.lane.b32.xlu0 %v782, 8
      %v810 = vpop.permute.xlu0 %809
      %811 = vrot.lane.b32.xlu0 %v786, 8
      %v812 = vpop.permute.xlu0 %811
      %813 = vrot.lane.b32.xlu0 %v790, 8
      %v814 = vpop.permute.xlu0 %813
      %815 = vrot.lane.b32.xlu0 %v794, 8
      %v816 = vpop.permute.xlu0 %815
      %817 = vrot.lane.b32.xlu0 %v798, 8
      %v818 = vpop.permute.xlu0 %817
      %819 = vrot.lane.b32.xlu0 %v802, 8
      %v820 = vpop.permute.xlu0 %819
      %821 = vrot.lane.b32.xlu0 %v806, 8
      %v822 = vpop.permute.xlu0 %821
      %vm831 = vcmask 93248
      %832 = vst.msk [vmem:[#allocation3] sm:$0xf] %vm831, %v808
      %833 = vst.msk [vmem:[#allocation3 + $0x4] sm:$0xf] %vm831, %v810
      %834 = vst.msk [vmem:[#allocation3 + $0x8] sm:$0xf] %vm831, %v812
      %835 = vst.msk [vmem:[#allocation3 + $0xc] sm:$0xf] %vm831, %v814
      %836 = vst.msk [vmem:[#allocation3 + $0x10] sm:$0xf] %vm831, %v816
      %837 = vst.msk [vmem:[#allocation3 + $0x14] sm:$0xf] %vm831, %v818
      %838 = vst.msk [vmem:[#allocation3 + $0x18] sm:$0xf] %vm831, %v820
      %839 = vst.msk [vmem:[#allocation3 + $0x1c] sm:$0xf] %vm831, %v822
      %v840 = vld [vmem:[%s352] sm:$0xf]
      %v841 = vld [vmem:[%s352 + $0x8] sm:$0xf]
      %v842 = vld [vmem:[%s352 + $0x10] sm:$0xf]
      %v843 = vld [vmem:[%s352 + $0x18] sm:$0xf]
      %v844 = vld [vmem:[%s352 + $0x20] sm:$0xf]
      %v845 = vld [vmem:[%s352 + $0x28] sm:$0xf]
      %v846 = vld [vmem:[%s352 + $0x30] sm:$0xf]
      %v847 = vld [vmem:[%s352 + $0x38] sm:$0xf]
      %856 = vrot.lane.b32.xlu0 %v840, 12
      %v857 = vpop.permute.xlu0 %856
      %858 = vrot.lane.b32.xlu0 %v841, 12
      %v859 = vpop.permute.xlu0 %858
      %860 = vrot.lane.b32.xlu0 %v842, 12
      %v861 = vpop.permute.xlu0 %860
      %862 = vrot.lane.b32.xlu0 %v843, 12
      %v863 = vpop.permute.xlu0 %862
      %864 = vrot.lane.b32.xlu0 %v844, 12
      %v865 = vpop.permute.xlu0 %864
      %866 = vrot.lane.b32.xlu0 %v845, 12
      %v867 = vpop.permute.xlu0 %866
      %868 = vrot.lane.b32.xlu0 %v846, 12
      %v869 = vpop.permute.xlu0 %868
      %870 = vrot.lane.b32.xlu0 %v847, 12
      %v871 = vpop.permute.xlu0 %870
      %vm880 = vcmask 126048
      %881 = vst.msk [vmem:[#allocation3] sm:$0xf] %vm880, %v857
      %882 = vst.msk [vmem:[#allocation3 + $0x4] sm:$0xf] %vm880, %v859
      %883 = vst.msk [vmem:[#allocation3 + $0x8] sm:$0xf] %vm880, %v861
      %884 = vst.msk [vmem:[#allocation3 + $0xc] sm:$0xf] %vm880, %v863
      %885 = vst.msk [vmem:[#allocation3 + $0x10] sm:$0xf] %vm880, %v865
      %886 = vst.msk [vmem:[#allocation3 + $0x14] sm:$0xf] %vm880, %v867
      %887 = vst.msk [vmem:[#allocation3 + $0x18] sm:$0xf] %vm880, %v869
      %888 = vst.msk [vmem:[#allocation3 + $0x1c] sm:$0xf] %vm880, %v871
      %v889 = vld [vmem:[%s352] sm:$0xf]
      %v890 = vld [vmem:[%s352 + $0x4] sm:$0x1]
      %v891 = vld [vmem:[%s352 + $0x8] sm:$0xf]
      %v892 = vld [vmem:[%s352 + $0xc] sm:$0x1]
      %v893 = vld [vmem:[%s352 + $0x10] sm:$0xf]
      %v894 = vld [vmem:[%s352 + $0x14] sm:$0x1]
      %v895 = vld [vmem:[%s352 + $0x18] sm:$0xf]
      %v896 = vld [vmem:[%s352 + $0x1c] sm:$0x1]
      %v897 = vld [vmem:[%s352 + $0x20] sm:$0xf]
      %v898 = vld [vmem:[%s352 + $0x24] sm:$0x1]
      %v899 = vld [vmem:[%s352 + $0x28] sm:$0xf]
      %v900 = vld [vmem:[%s352 + $0x2c] sm:$0x1]
      %v901 = vld [vmem:[%s352 + $0x30] sm:$0xf]
      %v902 = vld [vmem:[%s352 + $0x34] sm:$0x1]
      %v903 = vld [vmem:[%s352 + $0x38] sm:$0xf]
      %v904 = vld [vmem:[%s352 + $0x3c] sm:$0x1]
      %v906 = vshrl.u32 %v889, 16
      %v908 = vrot.slane %v906, 4
      %v909 = vshll.u32 %v889, 16
      %v911 = vrot.slane %v909, 5
      %v912 = vor.u32 %v908, %v911
      %v913 = vrot.slane %v912, 4
      %v915 = vshll.u32 %v890, 16
      %v917 = vrot.slane %v915, 5
      %v918 = vsel %vm594, %v913, %v917
      %v920 = vshrl.u32 %v891, 16
      %v922 = vrot.slane %v920, 4
      %v923 = vshll.u32 %v891, 16
      %v925 = vrot.slane %v923, 5
      %v926 = vor.u32 %v922, %v925
      %v927 = vrot.slane %v926, 4
      %v929 = vshll.u32 %v892, 16
      %v931 = vrot.slane %v929, 5
      %v932 = vsel %vm594, %v927, %v931
      %v934 = vshrl.u32 %v893, 16
      %v936 = vrot.slane %v934, 4
      %v937 = vshll.u32 %v893, 16
      %v939 = vrot.slane %v937, 5
      %v940 = vor.u32 %v936, %v939
      %v941 = vrot.slane %v940, 4
      %v943 = vshll.u32 %v894, 16
      %v945 = vrot.slane %v943, 5
      %v946 = vsel %vm594, %v941, %v945
      %v948 = vshrl.u32 %v895, 16
      %v950 = vrot.slane %v948, 4
      %v951 = vshll.u32 %v895, 16
      %v953 = vrot.slane %v951, 5
      %v954 = vor.u32 %v950, %v953
      %v955 = vrot.slane %v954, 4
      %v957 = vshll.u32 %v896, 16
      %v959 = vrot.slane %v957, 5
      %v960 = vsel %vm594, %v955, %v959
      %v962 = vshrl.u32 %v897, 16
      %v964 = vrot.slane %v962, 4
      %v965 = vshll.u32 %v897, 16
      %v967 = vrot.slane %v965, 5
      %v968 = vor.u32 %v964, %v967
      %v969 = vrot.slane %v968, 4
      %v971 = vshll.u32 %v898, 16
      %v973 = vrot.slane %v971, 5
      %v974 = vsel %vm594, %v969, %v973
      %v976 = vshrl.u32 %v899, 16
      %v978 = vrot.slane %v976, 4
      %v979 = vshll.u32 %v899, 16
      %v981 = vrot.slane %v979, 5
      %v982 = vor.u32 %v978, %v981
      %v983 = vrot.slane %v982, 4
      %v985 = vshll.u32 %v900, 16
      %v987 = vrot.slane %v985, 5
      %v988 = vsel %vm594, %v983, %v987
      %v990 = vshrl.u32 %v901, 16
      %v992 = vrot.slane %v990, 4
      %v993 = vshll.u32 %v901, 16
      %v995 = vrot.slane %v993, 5
      %v996 = vor.u32 %v992, %v995
      %v997 = vrot.slane %v996, 4
      %v999 = vshll.u32 %v902, 16
      %v1001 = vrot.slane %v999, 5
      %v1002 = vsel %vm594, %v997, %v1001
      %v1004 = vshrl.u32 %v903, 16
      %v1006 = vrot.slane %v1004, 4
      %v1007 = vshll.u32 %v903, 16
      %v1009 = vrot.slane %v1007, 5
      %v1010 = vor.u32 %v1006, %v1009
      %v1011 = vrot.slane %v1010, 4
      %v1013 = vshll.u32 %v904, 16
      %v1015 = vrot.slane %v1013, 5
      %v1016 = vsel %vm594, %v1011, %v1015
      %1017 = vrot.lane.b32.xlu0 %v918, 16
      %v1018 = vpop.permute.xlu0 %1017
      %1019 = vrot.lane.b32.xlu0 %v932, 16
      %v1020 = vpop.permute.xlu0 %1019
      %1021 = vrot.lane.b32.xlu0 %v946, 16
      %v1022 = vpop.permute.xlu0 %1021
      %1023 = vrot.lane.b32.xlu0 %v960, 16
      %v1024 = vpop.permute.xlu0 %1023
      %1025 = vrot.lane.b32.xlu0 %v974, 16
      %v1026 = vpop.permute.xlu0 %1025
      %1027 = vrot.lane.b32.xlu0 %v988, 16
      %v1028 = vpop.permute.xlu0 %1027
      %1029 = vrot.lane.b32.xlu0 %v1002, 16
      %v1030 = vpop.permute.xlu0 %1029
      %1031 = vrot.lane.b32.xlu0 %v1016, 16
      %v1032 = vpop.permute.xlu0 %1031
      %vm1041 = vcmask 158848
      %1042 = vst.msk [vmem:[#allocation3] sm:$0xf] %vm1041, %v1018
      %1043 = vst.msk [vmem:[#allocation3 + $0x4] sm:$0xf] %vm1041, %v1020
      %1044 = vst.msk [vmem:[#allocation3 + $0x8] sm:$0xf] %vm1041, %v1022
      %1045 = vst.msk [vmem:[#allocation3 + $0xc] sm:$0xf] %vm1041, %v1024
      %1046 = vst.msk [vmem:[#allocation3 + $0x10] sm:$0xf] %vm1041, %v1026
      %1047 = vst.msk [vmem:[#allocation3 + $0x14] sm:$0xf] %vm1041, %v1028
      %1048 = vst.msk [vmem:[#allocation3 + $0x18] sm:$0xf] %vm1041, %v1030
      %1049 = vst.msk [vmem:[#allocation3 + $0x1c] sm:$0xf] %vm1041, %v1032
      %v1050 = vld [vmem:[%s352] sm:$0xe]
      %v1051 = vld [vmem:[%s352 + $0x4] sm:$0x1]
      %v1052 = vld [vmem:[%s352 + $0x8] sm:$0xe]
      %v1053 = vld [vmem:[%s352 + $0xc] sm:$0x1]
      %v1054 = vld [vmem:[%s352 + $0x10] sm:$0xe]
      %v1055 = vld [vmem:[%s352 + $0x14] sm:$0x1]
      %v1056 = vld [vmem:[%s352 + $0x18] sm:$0xe]
      %v1057 = vld [vmem:[%s352 + $0x1c] sm:$0x1]
      %v1058 = vld [vmem:[%s352 + $0x20] sm:$0xe]
      %v1059 = vld [vmem:[%s352 + $0x24] sm:$0x1]
      %v1060 = vld [vmem:[%s352 + $0x28] sm:$0xe]
      %v1061 = vld [vmem:[%s352 + $0x2c] sm:$0x1]
      %v1062 = vld [vmem:[%s352 + $0x30] sm:$0xe]
      %v1063 = vld [vmem:[%s352 + $0x34] sm:$0x1]
      %v1064 = vld [vmem:[%s352 + $0x38] sm:$0xe]
      %v1065 = vld [vmem:[%s352 + $0x3c] sm:$0x1]
      %v1082 = vrot.slane %v1050, 5
      %v1083 = vrot.slane %v1082, 4
      %v1084 = vrot.slane %v1051, 5
      %v1085 = vsel %vm774, %v1083, %v1084
      %v1086 = vrot.slane %v1052, 5
      %v1087 = vrot.slane %v1086, 4
      %v1088 = vrot.slane %v1053, 5
      %v1089 = vsel %vm774, %v1087, %v1088
      %v1090 = vrot.slane %v1054, 5
      %v1091 = vrot.slane %v1090, 4
      %v1092 = vrot.slane %v1055, 5
      %v1093 = vsel %vm774, %v1091, %v1092
      %v1094 = vrot.slane %v1056, 5
      %v1095 = vrot.slane %v1094, 4
      %v1096 = vrot.slane %v1057, 5
      %v1097 = vsel %vm774, %v1095, %v1096
      %v1098 = vrot.slane %v1058, 5
      %v1099 = vrot.slane %v1098, 4
      %v1100 = vrot.slane %v1059, 5
      %v1101 = vsel %vm774, %v1099, %v1100
      %v1102 = vrot.slane %v1060, 5
      %v1103 = vrot.slane %v1102, 4
      %v1104 = vrot.slane %v1061, 5
      %v1105 = vsel %vm774, %v1103, %v1104
      %v1106 = vrot.slane %v1062, 5
      %v1107 = vrot.slane %v1106, 4
      %v1108 = vrot.slane %v1063, 5
      %v1109 = vsel %vm774, %v1107, %v1108
      %v1110 = vrot.slane %v1064, 5
      %v1111 = vrot.slane %v1110, 4
      %v1112 = vrot.slane %v1065, 5
      %v1113 = vsel %vm774, %v1111, %v1112
      %1114 = vrot.lane.b32.xlu0 %v1085, 20
      %v1115 = vpop.permute.xlu0 %1114
      %1116 = vrot.lane.b32.xlu0 %v1089, 20
      %v1117 = vpop.permute.xlu0 %1116
      %1118 = vrot.lane.b32.xlu0 %v1093, 20
      %v1119 = vpop.permute.xlu0 %1118
      %1120 = vrot.lane.b32.xlu0 %v1097, 20
      %v1121 = vpop.permute.xlu0 %1120
      %1122 = vrot.lane.b32.xlu0 %v1101, 20
      %v1123 = vpop.permute.xlu0 %1122
      %1124 = vrot.lane.b32.xlu0 %v1105, 20
      %v1125 = vpop.permute.xlu0 %1124
      %1126 = vrot.lane.b32.xlu0 %v1109, 20
      %v1127 = vpop.permute.xlu0 %1126
      %1128 = vrot.lane.b32.xlu0 %v1113, 20
      %v1129 = vpop.permute.xlu0 %1128
      %vm1138 = vcmask 191648
      %1139 = vst.msk [vmem:[#allocation3] sm:$0xf] %vm1138, %v1115
      %1140 = vst.msk [vmem:[#allocation3 + $0x4] sm:$0xf] %vm1138, %v1117
      %1141 = vst.msk [vmem:[#allocation3 + $0x8] sm:$0xf] %vm1138, %v1119
      %1142 = vst.msk [vmem:[#allocation3 + $0xc] sm:$0xf] %vm1138, %v1121
      %1143 = vst.msk [vmem:[#allocation3 + $0x10] sm:$0xf] %vm1138, %v1123
      %1144 = vst.msk [vmem:[#allocation3 + $0x14] sm:$0xf] %vm1138, %v1125
      %1145 = vst.msk [vmem:[#allocation3 + $0x18] sm:$0xf] %vm1138, %v1127
      %1146 = vst.msk [vmem:[#allocation3 + $0x1c] sm:$0xf] %vm1138, %v1129
      %s1147 = scalar_lea.vmem [#allocation2], 16
      %v1148 = vld [vmem:[%s1147] sm:$0xf]
      %v1149 = vld [vmem:[%s1147 + $0x8] sm:$0xf]
      %v1150 = vld [vmem:[%s1147 + $0x10] sm:$0xf]
      %v1151 = vld [vmem:[%s1147 + $0x18] sm:$0xf]
      %v1152 = vld [vmem:[%s1147 + $0x20] sm:$0xf]
      %v1153 = vld [vmem:[%s1147 + $0x28] sm:$0xf]
      %v1154 = vld [vmem:[%s1147 + $0x30] sm:$0xf]
      %v1155 = vld [vmem:[%s1147 + $0x38] sm:$0xf]
      %1164 = vrot.lane.b32.xlu0 %v1148, 24
      %v1165 = vpop.permute.xlu0 %1164
      %1166 = vrot.lane.b32.xlu0 %v1149, 24
      %v1167 = vpop.permute.xlu0 %1166
      %1168 = vrot.lane.b32.xlu0 %v1150, 24
      %v1169 = vpop.permute.xlu0 %1168
      %1170 = vrot.lane.b32.xlu0 %v1151, 24
      %v1171 = vpop.permute.xlu0 %1170
      %1172 = vrot.lane.b32.xlu0 %v1152, 24
      %v1173 = vpop.permute.xlu0 %1172
      %1174 = vrot.lane.b32.xlu0 %v1153, 24
      %v1175 = vpop.permute.xlu0 %1174
      %1176 = vrot.lane.b32.xlu0 %v1154, 24
      %v1177 = vpop.permute.xlu0 %1176
      %1178 = vrot.lane.b32.xlu0 %v1155, 24
      %v1179 = vpop.permute.xlu0 %1178
      %vm1188 = vcmask 224448
      %1189 = vst.msk [vmem:[#allocation3] sm:$0xf] %vm1188, %v1165
      %1190 = vst.msk [vmem:[#allocation3 + $0x4] sm:$0xf] %vm1188, %v1167
      %1191 = vst.msk [vmem:[#allocation3 + $0x8] sm:$0xf] %vm1188, %v1169
      %1192 = vst.msk [vmem:[#allocation3 + $0xc] sm:$0xf] %vm1188, %v1171
      %1193 = vst.msk [vmem:[#allocation3 + $0x10] sm:$0xf] %vm1188, %v1173
      %1194 = vst.msk [vmem:[#allocation3 + $0x14] sm:$0xf] %vm1188, %v1175
      %1195 = vst.msk [vmem:[#allocation3 + $0x18] sm:$0xf] %vm1188, %v1177
      %1196 = vst.msk [vmem:[#allocation3 + $0x1c] sm:$0xf] %vm1188, %v1179
      %v1197 = vld [vmem:[%s1147] sm:$0xf]
      %v1198 = vld [vmem:[%s1147 + $0x4] sm:$0x1]
      %v1199 = vld [vmem:[%s1147 + $0x8] sm:$0xf]
      %v1200 = vld [vmem:[%s1147 + $0xc] sm:$0x1]
      %v1201 = vld [vmem:[%s1147 + $0x10] sm:$0xf]
      %v1202 = vld [vmem:[%s1147 + $0x14] sm:$0x1]
      %v1203 = vld [vmem:[%s1147 + $0x18] sm:$0xf]
      %v1204 = vld [vmem:[%s1147 + $0x1c] sm:$0x1]
      %v1205 = vld [vmem:[%s1147 + $0x20] sm:$0xf]
      %v1206 = vld [vmem:[%s1147 + $0x24] sm:$0x1]
      %v1207 = vld [vmem:[%s1147 + $0x28] sm:$0xf]
      %v1208 = vld [vmem:[%s1147 + $0x2c] sm:$0x1]
      %v1209 = vld [vmem:[%s1147 + $0x30] sm:$0xf]
      %v1210 = vld [vmem:[%s1147 + $0x34] sm:$0x1]
      %v1211 = vld [vmem:[%s1147 + $0x38] sm:$0xf]
      %v1212 = vld [vmem:[%s1147 + $0x3c] sm:$0x1]
      %v1214 = vshrl.u32 %v1197, 16
      %v1216 = vrot.slane %v1214, 4
      %v1217 = vshll.u32 %v1197, 16
      %v1219 = vrot.slane %v1217, 5
      %v1220 = vor.u32 %v1216, %v1219
      %v1221 = vrot.slane %v1220, 4
      %v1223 = vshll.u32 %v1198, 16
      %v1225 = vrot.slane %v1223, 5
      %v1226 = vsel %vm594, %v1221, %v1225
      %v1228 = vshrl.u32 %v1199, 16
      %v1230 = vrot.slane %v1228, 4
      %v1231 = vshll.u32 %v1199, 16
      %v1233 = vrot.slane %v1231, 5
      %v1234 = vor.u32 %v1230, %v1233
      %v1235 = vrot.slane %v1234, 4
      %v1237 = vshll.u32 %v1200, 16
      %v1239 = vrot.slane %v1237, 5
      %v1240 = vsel %vm594, %v1235, %v1239
      %v1242 = vshrl.u32 %v1201, 16
      %v1244 = vrot.slane %v1242, 4
      %v1245 = vshll.u32 %v1201, 16
      %v1247 = vrot.slane %v1245, 5
      %v1248 = vor.u32 %v1244, %v1247
      %v1249 = vrot.slane %v1248, 4
      %v1251 = vshll.u32 %v1202, 16
      %v1253 = vrot.slane %v1251, 5
      %v1254 = vsel %vm594, %v1249, %v1253
      %v1256 = vshrl.u32 %v1203, 16
      %v1258 = vrot.slane %v1256, 4
      %v1259 = vshll.u32 %v1203, 16
      %v1261 = vrot.slane %v1259, 5
      %v1262 = vor.u32 %v1258, %v1261
      %v1263 = vrot.slane %v1262, 4
      %v1265 = vshll.u32 %v1204, 16
      %v1267 = vrot.slane %v1265, 5
      %v1268 = vsel %vm594, %v1263, %v1267
      %v1270 = vshrl.u32 %v1205, 16
      %v1272 = vrot.slane %v1270, 4
      %v1273 = vshll.u32 %v1205, 16
      %v1275 = vrot.slane %v1273, 5
      %v1276 = vor.u32 %v1272, %v1275
      %v1277 = vrot.slane %v1276, 4
      %v1279 = vshll.u32 %v1206, 16
      %v1281 = vrot.slane %v1279, 5
      %v1282 = vsel %vm594, %v1277, %v1281
      %v1284 = vshrl.u32 %v1207, 16
      %v1286 = vrot.slane %v1284, 4
      %v1287 = vshll.u32 %v1207, 16
      %v1289 = vrot.slane %v1287, 5
      %v1290 = vor.u32 %v1286, %v1289
      %v1291 = vrot.slane %v1290, 4
      %v1293 = vshll.u32 %v1208, 16
      %v1295 = vrot.slane %v1293, 5
      %v1296 = vsel %vm594, %v1291, %v1295
      %v1298 = vshrl.u32 %v1209, 16
      %v1300 = vrot.slane %v1298, 4
      %v1301 = vshll.u32 %v1209, 16
      %v1303 = vrot.slane %v1301, 5
      %v1304 = vor.u32 %v1300, %v1303
      %v1305 = vrot.slane %v1304, 4
      %v1307 = vshll.u32 %v1210, 16
      %v1309 = vrot.slane %v1307, 5
      %v1310 = vsel %vm594, %v1305, %v1309
      %v1312 = vshrl.u32 %v1211, 16
      %v1314 = vrot.slane %v1312, 4
      %v1315 = vshll.u32 %v1211, 16
      %v1317 = vrot.slane %v1315, 5
      %v1318 = vor.u32 %v1314, %v1317
      %v1319 = vrot.slane %v1318, 4
      %v1321 = vshll.u32 %v1212, 16
      %v1323 = vrot.slane %v1321, 5
      %v1324 = vsel %vm594, %v1319, %v1323
      %1325 = vrot.lane.b32.xlu0 %v1226, 28
      %v1326 = vpop.permute.xlu0 %1325
      %1327 = vrot.lane.b32.xlu0 %v1240, 28
      %v1328 = vpop.permute.xlu0 %1327
      %1329 = vrot.lane.b32.xlu0 %v1254, 28
      %v1330 = vpop.permute.xlu0 %1329
      %1331 = vrot.lane.b32.xlu0 %v1268, 28
      %v1332 = vpop.permute.xlu0 %1331
      %1333 = vrot.lane.b32.xlu0 %v1282, 28
      %v1334 = vpop.permute.xlu0 %1333
      %1335 = vrot.lane.b32.xlu0 %v1296, 28
      %v1336 = vpop.permute.xlu0 %1335
      %1337 = vrot.lane.b32.xlu0 %v1310, 28
      %v1338 = vpop.permute.xlu0 %1337
      %1339 = vrot.lane.b32.xlu0 %v1324, 28
      %v1340 = vpop.permute.xlu0 %1339
      %vm1349 = vcmask 257248
      %1350 = vst.msk [vmem:[#allocation3] sm:$0xf] %vm1349, %v1326
      %1351 = vst.msk [vmem:[#allocation3 + $0x4] sm:$0xf] %vm1349, %v1328
      %1352 = vst.msk [vmem:[#allocation3 + $0x8] sm:$0xf] %vm1349, %v1330
      %1353 = vst.msk [vmem:[#allocation3 + $0xc] sm:$0xf] %vm1349, %v1332
      %1354 = vst.msk [vmem:[#allocation3 + $0x10] sm:$0xf] %vm1349, %v1334
      %1355 = vst.msk [vmem:[#allocation3 + $0x14] sm:$0xf] %vm1349, %v1336
      %1356 = vst.msk [vmem:[#allocation3 + $0x18] sm:$0xf] %vm1349, %v1338
      %1357 = vst.msk [vmem:[#allocation3 + $0x1c] sm:$0xf] %vm1349, %v1340
      %v1358 = vld [vmem:[%s1147] sm:$0xe]
      %v1359 = vld [vmem:[%s1147 + $0x4] sm:$0x1]
      %v1360 = vld [vmem:[%s1147 + $0x8] sm:$0xe]
      %v1361 = vld [vmem:[%s1147 + $0xc] sm:$0x1]
      %v1362 = vld [vmem:[%s1147 + $0x10] sm:$0xe]
      %v1363 = vld [vmem:[%s1147 + $0x14] sm:$0x1]
      %v1364 = vld [vmem:[%s1147 + $0x18] sm:$0xe]
      %v1365 = vld [vmem:[%s1147 + $0x1c] sm:$0x1]
      %v1366 = vld [vmem:[%s1147 + $0x20] sm:$0xe]
      %v1367 = vld [vmem:[%s1147 + $0x24] sm:$0x1]
      %v1368 = vld [vmem:[%s1147 + $0x28] sm:$0xe]
      %v1369 = vld [vmem:[%s1147 + $0x2c] sm:$0x1]
      %v1370 = vld [vmem:[%s1147 + $0x30] sm:$0xe]
      %v1371 = vld [vmem:[%s1147 + $0x34] sm:$0x1]
      %v1372 = vld [vmem:[%s1147 + $0x38] sm:$0xe]
      %v1373 = vld [vmem:[%s1147 + $0x3c] sm:$0x1]
      %v1390 = vrot.slane %v1358, 5
      %v1391 = vrot.slane %v1390, 4
      %v1392 = vrot.slane %v1359, 5
      %v1393 = vsel %vm774, %v1391, %v1392
      %v1394 = vrot.slane %v1360, 5
      %v1395 = vrot.slane %v1394, 4
      %v1396 = vrot.slane %v1361, 5
      %v1397 = vsel %vm774, %v1395, %v1396
      %v1398 = vrot.slane %v1362, 5
      %v1399 = vrot.slane %v1398, 4
      %v1400 = vrot.slane %v1363, 5
      %v1401 = vsel %vm774, %v1399, %v1400
      %v1402 = vrot.slane %v1364, 5
      %v1403 = vrot.slane %v1402, 4
      %v1404 = vrot.slane %v1365, 5
      %v1405 = vsel %vm774, %v1403, %v1404
      %v1406 = vrot.slane %v1366, 5
      %v1407 = vrot.slane %v1406, 4
      %v1408 = vrot.slane %v1367, 5
      %v1409 = vsel %vm774, %v1407, %v1408
      %v1410 = vrot.slane %v1368, 5
      %v1411 = vrot.slane %v1410, 4
      %v1412 = vrot.slane %v1369, 5
      %v1413 = vsel %vm774, %v1411, %v1412
      %v1414 = vrot.slane %v1370, 5
      %v1415 = vrot.slane %v1414, 4
      %v1416 = vrot.slane %v1371, 5
      %v1417 = vsel %vm774, %v1415, %v1416
      %v1418 = vrot.slane %v1372, 5
      %v1419 = vrot.slane %v1418, 4
      %v1420 = vrot.slane %v1373, 5
      %v1421 = vsel %vm774, %v1419, %v1420
      %1422 = vrot.lane.b32.xlu0 %v1393, 32
      %v1423 = vpop.permute.xlu0 %1422
      %1424 = vrot.lane.b32.xlu0 %v1397, 32
      %v1425 = vpop.permute.xlu0 %1424
      %1426 = vrot.lane.b32.xlu0 %v1401, 32
      %v1427 = vpop.permute.xlu0 %1426
      %1428 = vrot.lane.b32.xlu0 %v1405, 32
      %v1429 = vpop.permute.xlu0 %1428
      %1430 = vrot.lane.b32.xlu0 %v1409, 32
      %v1431 = vpop.permute.xlu0 %1430
      %1432 = vrot.lane.b32.xlu0 %v1413, 32
      %v1433 = vpop.permute.xlu0 %1432
      %1434 = vrot.lane.b32.xlu0 %v1417, 32
      %v1435 = vpop.permute.xlu0 %1434
      %1436 = vrot.lane.b32.xlu0 %v1421, 32
      %v1437 = vpop.permute.xlu0 %1436
      %vm1446 = vcmask 290048
      %1447 = vst.msk [vmem:[#allocation3] sm:$0xf] %vm1446, %v1423
      %1448 = vst.msk [vmem:[#allocation3 + $0x4] sm:$0xf] %vm1446, %v1425
      %1449 = vst.msk [vmem:[#allocation3 + $0x8] sm:$0xf] %vm1446, %v1427
      %1450 = vst.msk [vmem:[#allocation3 + $0xc] sm:$0xf] %vm1446, %v1429
      %1451 = vst.msk [vmem:[#allocation3 + $0x10] sm:$0xf] %vm1446, %v1431
      %1452 = vst.msk [vmem:[#allocation3 + $0x14] sm:$0xf] %vm1446, %v1433
      %1453 = vst.msk [vmem:[#allocation3 + $0x18] sm:$0xf] %vm1446, %v1435
      %1454 = vst.msk [vmem:[#allocation3 + $0x1c] sm:$0xf] %vm1446, %v1437
      %v1455 = vld [vmem:[#allocation3] sm:$0xf]
      %v1456 = vld [vmem:[#allocation3 + $0x4] sm:$0xf]
      %v1457 = vld [vmem:[#allocation3 + $0x8] sm:$0xf]
      %v1458 = vld [vmem:[#allocation3 + $0xc] sm:$0xf]
      %v1459 = vld [vmem:[#allocation3 + $0x10] sm:$0xf]
      %v1460 = vld [vmem:[#allocation3 + $0x14] sm:$0xf]
      %v1461 = vld [vmem:[#allocation3 + $0x18] sm:$0xf]
      %v1462 = vld [vmem:[#allocation3 + $0x1c] sm:$0xf]
      %v1463 = vld [vmem:[%s3] sm:$0xf]
      %v1464 = vld [vmem:[%s3 + $0x4] sm:$0xf]
      %v1465 = vld [vmem:[%s3 + $0x8] sm:$0xf]
      %v1466 = vld [vmem:[%s3 + $0xc] sm:$0xf]
      %v1467 = vld [vmem:[%s3 + $0x10] sm:$0x3]
      %v1468 = vld [vmem:[%s4] sm:$0x1]
      %v1470 = vlaneseq
      %v1471 = vshrl.u32 %v1470, 7
      %v1472 = vsub.s32 0, %v1471
      %v1473 = vrot.slane %v1468, %v1472
      %v1483 = vunpack.c.l.b16 %v1455
      %v1484 = vunpack.c.l.b16 %v1456
      %v1485 = vunpack.c.l.b16 %v1457
      %v1486 = vunpack.c.l.b16 %v1458
      %v1487 = vunpack.c.l.b16 %v1459
      %v1488 = vunpack.c.l.b16 %v1460
      %v1489 = vunpack.c.l.b16 %v1461
      %v1490 = vunpack.c.l.b16 %v1462
      %v1491 = vpack.c.b16 %v1484, %v1483
      %v1492 = vpack.c.b16 %v1486, %v1485
      %v1493 = vpack.c.b16 %v1488, %v1487
      %v1494 = vpack.c.b16 %v1490, %v1489
      %v1500 = vunpack.c.l.b16 %v1463
      %v1501 = vunpack.c.l.b16 %v1464
      %v1502 = vunpack.c.l.b16 %v1465
      %v1503 = vunpack.c.l.b16 %v1466
      %v1504 = vunpack.c.l.b16 %v1467
      %v1505 = vpack.c.b16 %v1501, %v1500
      %v1506 = vpack.c.b16 %v1503, %v1502
      %v1507 = vpack.c.b16 %v1504, %v1504
      %vm1510 = vcmask 293888
      %v1512 = vsel %vm1510, %v1491, 0
      %v1515 = vsel %vm1510, %v1492, 0
      %v1518 = vsel %vm1510, %v1493, 0
      %v1521 = vsel %vm1510, %v1494, 0
      %vm1523 = vcmask 1041408
      %v1525 = vsel %vm1523, %v1507, 0
      %1527 = vmatprep.subr.bf16.mxu0 0
      %1528 = vmatpush1.bf16.msra.mxu0 %v1505
      %1529 = vmatprep.subr.bf16.mxu0 0
      %1530 = vmatpush1.bf16.msra.mxu0 %v1506
      %1531 = vmatprep.subr.bf16.mxu0 0
      %1532 = vmatpush1.bf16.msra.mxu0 %v1525
      %1533 = vmatprep.subr.bf16.mxu0 0
      %1534 = vmatpush1.bf16.msra.mxu0 0
      %1535 = vmatprep.subr.bf16.mxu0 0
      %1536 = vmatpush1.bf16.msra.mxu0 0
      %1537 = vmatprep.subr.bf16.mxu0 0
      %1538 = vmatpush1.bf16.msra.mxu0 0
      %1539 = vmatprep.subr.bf16.mxu0 0
      %1540 = vmatpush1.bf16.msra.mxu0 0
      %1541 = vmatprep.subr.bf16.mxu0 0
      %1542 = vmatpush1.bf16.msra.mxu0 0
      %1543 = vmatprep.subr.bf16.mxu0 0
      %1544 = vmatpush1.bf16.msra.mxu0 0
      %1545 = vmatprep.subr.bf16.mxu0 0
      %1546 = vmatpush1.bf16.msra.mxu0 0
      %1547 = vmatprep.subr.bf16.mxu0 0
      %1548 = vmatpush1.bf16.msra.mxu0 0
      %1549 = vmatprep.subr.bf16.mxu0 0
      %1550 = vmatpush1.bf16.msra.mxu0 0
      %1551 = vmatprep.subr.bf16.mxu0 0
      %1552 = vmatpush1.bf16.msra.mxu0 0
      %1553 = vmatprep.subr.bf16.mxu0 0
      %1554 = vmatpush1.bf16.msra.mxu0 0
      %1555 = vmatprep.subr.bf16.mxu0 0
      %1556 = vmatpush1.bf16.msra.mxu0 0
      %1557 = vmatprep.subr.bf16.mxu0 0
      %1558 = vmatpush1.bf16.msra.mxu0 0
      %1559 = vmatprep.mubr.bf16.mxu0 0
      %1560 = vmatmul.mubr.bf16.gmra.mrb[0].mxu0 %v1512
      %v1561 = vpop.f32.mrb[0].mxu0
      %v1562 = vadd.f32 %v1473, %v1561
      %v1563 = vpop.f32.mrb[0].mxu0
      %v1564 = vpop.f32.mrb[0].mxu0
      %v1565 = vadd.f32 %v1473, %v1564
      %v1566 = vpop.f32.mrb[0].mxu0
      %1567 = vmatprep.mubr.bf16.mxu0 0
      %1568 = vmatmul.mubr.bf16.gmra.mrb[0].mxu0 %v1515
      %v1569 = vpop.f32.mrb[0].mxu0
      %v1570 = vadd.f32 %v1473, %v1569
      %v1571 = vpop.f32.mrb[0].mxu0
      %v1572 = vpop.f32.mrb[0].mxu0
      %v1573 = vadd.f32 %v1473, %v1572
      %v1574 = vpop.f32.mrb[0].mxu0
      %1575 = vmatprep.mubr.bf16.mxu0 0
      %1576 = vmatmul.mubr.bf16.gmra.mrb[0].mxu0 %v1518
      %v1577 = vpop.f32.mrb[0].mxu0
      %v1578 = vadd.f32 %v1473, %v1577
      %v1579 = vpop.f32.mrb[0].mxu0
      %v1580 = vpop.f32.mrb[0].mxu0
      %v1581 = vadd.f32 %v1473, %v1580
      %v1582 = vpop.f32.mrb[0].mxu0
      %1583 = vmatprep.mubr.bf16.mxu0 0
      %1584 = vmatmul.mubr.bf16.gmra.mrb[0].mxu0 %v1521
      %v1585 = vpop.f32.mrb[0].mxu0
      %v1586 = vadd.f32 %v1473, %v1585
      %v1587 = vpop.f32.mrb[0].mxu0
      %v1588 = vpop.f32.mrb[0].mxu0
      %v1589 = vadd.f32 %v1473, %v1588
      %v1590 = vpop.f32.mrb[0].mxu0
      %1591 = vdwg.mxu0
      %vm1592 = vcmask 64512
      %1593 = vst.msk [vmem:[%s224] sm:$0xff] %vm1592, %v1562
      %1594 = vst.msk [vmem:[%s224 + $0x8] sm:$0xff] %vm1592, %v1565
      %1595 = vst.msk [vmem:[%s224 + $0x10] sm:$0xff] %vm1592, %v1570
      %1596 = vst.msk [vmem:[%s224 + $0x18] sm:$0xff] %vm1592, %v1573
      %1597 = vst.msk [vmem:[%s224 + $0x20] sm:$0xff] %vm1592, %v1578
      %1598 = vst.msk [vmem:[%s224 + $0x28] sm:$0xff] %vm1592, %v1581
      %1599 = vst.msk [vmem:[%s224 + $0x30] sm:$0xff] %vm1592, %v1586
      %1600 = vst.msk [vmem:[%s224 + $0x38] sm:$0xff] %vm1592, %v1589
      %p1601 = scmp.lt.s32.totalorder %s16, 1
      %s1602 = scalar_select %p1601, %s16, 1
      %s1603 = smul.addr %s1602, 8
      %s1604 = smul.addr %s1603, 8
      %s1605 = scalar_lea.vmem %s5, %s1604
      // Predicated region
      $region41: #{down_forward.1} parent=39 // pred_check
        %p1606 = pneg %p144
      $region42: #{down_forward.1} parent=39 // pred_check_branch
        %1608 = sbr.rel (%p1606) target = $region44
      $region43: #{down_forward.1} parent=39 // pred_region
        _
      $region44: #{down_forward.1} parent=39 // pred_fallthru
        _
    $region40: #{down_forward.1} parent=5 // pred_fallthru
      _
    %p1609 = scmp.le.s32.totalorder 2, %s11
    // Predicated region
    $region45: #{down_forward.1} parent=5 // pred_check
      %p1610 = pneg %p1609
    $region46: #{down_forward.1} parent=5 // pred_check_branch
      %1612 = sbr.rel (%p1610) target = $region48
    $region47: #{down_forward.1} parent=5 // pred_region
      %s1613 = ssub.s32 %s11, 2
      // Predicated region
      $region49: #{down_forward.1} parent=47 // pred_check
        %p1614 = pneg %p150
      $region50: #{down_forward.1} parent=47 // pred_check_branch
        %1616 = sbr.rel (%p1614) target = $region52
      $region51: #{down_forward.1} parent=47 // pred_region
        %p1617 = scmp.lt.s32.totalorder %s17, 1
        %s1618 = scalar_select %p1617, %s17, 1
        %s1619 = smul.addr %s1618, 8
        %s1620 = smul.addr %s1619, 8
        %s1621 = scalar_lea.vmem %s5, %s1620
      $region52: #{down_forward.1} parent=47 // pred_fallthru
        _
    $region48: #{down_forward.1} parent=5 // pred_fallthru
      _
  $region6: #{down_forward.1} parent=0 // loop_footer
    %s15 = sadd.s32 1, %s11
  $region7: #{down_forward.1} parent=0 // loop_footer_branch
    %10 = sbr.rel target = $region3
  $region8: #{down_forward.1} parent=0 // loop_exit
    _

</llo_original>
